<compile_context>
chip_gen: v5e
topology: v5e:2x2
jax: 0.10.0
libtpu: 0.0.40
codegen_flags: <defaults>
</compile_context>

<pallas_src>
import functools

import numpy as np
import jax
import jax.numpy as jnp
from jax import lax
from jax.experimental import pallas as pl
from jax.experimental.pallas import tpu as pltpu


# ----------------------------- Pallas kernel --------------------------------
def _s4_block_kernel(x_ref, wt_ref, pk_ref, t_ref, o_ref, *, d_model):
    # x_ref:  (Lp, TB, Dp)  sequence-major block; Dp lane-padded to 128k
    # wt_ref: (Dp, Dp)      input_proj weight, pre-transposed to (in, out)
    # pk_ref: (3, Dp)       row 0 = bias, row 1 = LN gamma, row 2 = LN beta (f32)
    # t_ref:  (Lp, Lp)      causal Toeplitz matrix from the S4 kernel
    # o_ref:  (Lp, TB, Dp)  output block
    lp, tb, dp = x_ref.shape

    # ---- input projection: one fused (Lp*TB, Dp) matmul, f32 accumulation ---
    x2 = x_ref[...].reshape(lp * tb, dp).astype(wt_ref.dtype)
    h = jnp.dot(x2, wt_ref[...], preferred_element_type=jnp.float32)
    h = h + pk_ref[0:1, :]                                   # bias

    # ---- LayerNorm over the valid d_model lanes (f32, biased var, eps=1e-5) -
    # Padded lanes of h are exact zeros (zero-padded W/bias), so no lane mask
    # is needed: sum over Dp lanes / D is the mean over the D valid lanes.
    inv_d = jnp.float32(1.0 / d_model)
    mu = jnp.sum(h, axis=-1, keepdims=True) * inv_d
    var = jnp.sum(h * h, axis=-1, keepdims=True) * inv_d - mu * mu
    inv_std = lax.rsqrt(var + jnp.float32(1e-5))
    hn = (h - mu) * inv_std * pk_ref[1:2, :] + pk_ref[2:3, :]
    # gamma/beta are zero in the padded lanes, so padded lanes of hn are 0.

    # ---- causal depthwise S4 conv: ONE fused Toeplitz matmul over all TB ----
    # hn rows are (l-major, b-minor), so (Lp, TB*Dp) keeps each (b, d) channel
    # in its own column; the single dot fills the MXU N dimension.
    hn_w = hn.reshape(lp, tb * dp)
    y = jnp.dot(t_ref[...], hn_w.astype(t_ref.dtype),
                preferred_element_type=jnp.float32)
    # dropout = identity (eval); residual with the normalized activations.
    o_ref[...] = (y + hn_w).reshape(lp, tb, dp).astype(o_ref.dtype)


# ------------------------------- host-side helpers ---------------------------
def build_s4_toeplitz(A, Bp, Cp, Dp_param, L):
    """Real causal S4 kernel K[l] and its (L, L) Toeplitz matrix (f32).

    Build this ONCE per (parameters, L) and reuse it across forward calls —
    the host-side numpy work / upload is not part of the steady-state path.
    """
    A = np.asarray(A)
    Bp = np.asarray(Bp)
    Cp = np.asarray(Cp)
    Dp_param = np.asarray(Dp_param)
    ls = np.arange(L)[:, None]                          # (L, 1)
    powers = np.power(A[None, :], ls)                   # (L, d_state) complex
    Kc = np.sum(powers * (Bp * Cp)[None, :], axis=-1) + np.sum(Dp_param)
    K = np.real(Kc).astype(np.float32)                  # (L,)
    idx = np.arange(L)
    lag = idx[:, None] - idx[None, :]
    T = np.where(lag >= 0, K[np.clip(lag, 0, L - 1)], 0.0).astype(np.float32)
    return jnp.asarray(T)


def _tpu_vmem_and_cores():
    """Best-effort query of per-TensorCore VMEM capacity and core count."""
    vmem_cap = 64 << 20          # conservative default = v7x per-TC VMEM
    num_cores = 1
    try:
        info = pltpu.get_tpu_info()
        vmem_cap = int(getattr(info, "vmem_capacity_bytes", vmem_cap))
        for attr in ("num_cores", "core_count", "num_cores_per_chip"):
            if hasattr(info, attr):
                num_cores = int(getattr(info, attr))
                break
    except Exception:
        pass
    return vmem_cap, num_cores


def _choose_batch_tile(Bn, Lp, Dp, resident_bytes, vmem_cap, num_cores):
    """Batch elements per grid step.

    Budget = VMEM capacity minus the resident W/T/pack footprint and ~8 MiB of
    headroom.  Per batch element we account for the double-buffered f32 input
    and output blocks PLUS the in-kernel intermediates (x_bf16, h, hn, hn_bf16,
    y), ~36 bytes / element total.
    """
    per_b = Lp * Dp * 36
    budget = max(vmem_cap - resident_bytes - (8 << 20), 4 << 20)
    tb = int(max(1, min(Bn, budget // per_b)))
    # Give both TensorCores work on dual-core parts (v7x) when the batch is
    # large enough that each half remains a multiple of 8 (sublane constraint).
    if num_cores >= 2 and tb >= Bn and Bn >= 16:
        tb = Bn // 2
    # Mosaic block constraint: a partial batch block (tb < Bn) must be a
    # sublane multiple of 8.
    if tb < Bn:
        tb = max(8, (tb // 8) * 8)
    return tb


def s4_block_forward(x, w, b, gamma, beta, T, *, mxu_dtype=jnp.bfloat16):
    """S4 block forward.  x: (B, L, D) f32.  T: (L, L) causal Toeplitz (f32).

    mxu_dtype controls the operand precision of the two MXU matmuls
    (accumulation is always f32).  Pass jnp.float32 for precision-sensitive
    configurations (very long L / slowly decaying kernels).
    """
    Bn, L, D = x.shape
    Dp = ((D + 127) // 128) * 128            # lane-dense: pad d_model to 128k
    Lp = ((L + 7) // 8) * 8                  # sublane-aligned sequence length
    mxu_bytes = jnp.dtype(mxu_dtype).itemsize

    vmem_cap, num_cores = _tpu_vmem_and_cores()
    # Worst case (double-buffered) resident footprint used by the tile picker.
    resident = 2 * (Dp * Dp * mxu_bytes + Lp * Lp * mxu_bytes + 8 * Dp * 4)
    TB = _choose_batch_tile(Bn, Lp, Dp, resident, vmem_cap, num_cores)
    Bpad = ((Bn + TB - 1) // TB) * TB

    # Sequence-major layout (L, B, D): both in-kernel views (Lp*TB, Dp) and
    # (Lp, TB*Dp) are then cheap; a real model would keep this layout between
    # layers instead of transposing here.
    xp = jnp.transpose(x, (1, 0, 2))
    xp = jnp.pad(xp, ((0, Lp - L), (0, Bpad - Bn), (0, Dp - D)))

    wt = jnp.pad(jnp.asarray(w).T, ((0, Dp - D), (0, Dp - D))).astype(mxu_dtype)
    pack = jnp.stack([
        jnp.pad(jnp.asarray(b), (0, Dp - D)),
        jnp.pad(jnp.asarray(gamma), (0, Dp - D)),
        jnp.pad(jnp.asarray(beta), (0, Dp - D)),
    ]).astype(jnp.float32)                                   # (3, Dp)
    t_m = jnp.pad(jnp.asarray(T), ((0, Lp - L), (0, Lp - L))).astype(mxu_dtype)

    flops = 2 * Bpad * Lp * Dp * Dp + 2 * Bpad * Lp * Lp * Dp
    bytes_accessed = (2 * Bpad * Lp * Dp * 4       # x in + out (f32)
                      + Dp * Dp * mxu_bytes        # W^T
                      + Lp * Lp * mxu_bytes        # Toeplitz
                      + 3 * Dp * 4)                # packed bias/gamma/beta
    # Working set including intermediates; keep >= 8 MiB below capacity.
    est_vmem = TB * Lp * Dp * 36 + resident
    vmem_limit = int(min(vmem_cap - (8 << 20),
                         max(32 << 20, int(est_vmem * 1.25))))

    def _run(single_buffer_resident):
        res_kw = {}
        if single_buffer_resident and hasattr(pl, "Buffered"):
            # Grid-invariant inputs do not need double-buffering.
            res_kw = dict(pipeline_mode=pl.Buffered(buffer_count=1))
        in_specs = [
            pl.BlockSpec((Lp, TB, Dp), lambda i: (0, i, 0)),            # x
            pl.BlockSpec((Dp, Dp), lambda i: (0, 0), **res_kw),         # W^T
            pl.BlockSpec((3, Dp), lambda i: (0, 0), **res_kw),          # params
            pl.BlockSpec((Lp, Lp), lambda i: (0, 0), **res_kw),         # T
        ]
        out = pl.pallas_call(
            functools.partial(_s4_block_kernel, d_model=D),
            out_shape=jax.ShapeDtypeStruct((Lp, Bpad, Dp), x.dtype),
            grid=(Bpad // TB,),
            in_specs=in_specs,
            out_specs=pl.BlockSpec((Lp, TB, Dp), lambda i: (0, i, 0)),
            compiler_params=pltpu.CompilerParams(
                dimension_semantics=("parallel",),
                vmem_limit_bytes=vmem_limit),
            cost_estimate=pl.CostEstimate(
                flops=flops, transcendentals=Bpad * Lp,
                bytes_accessed=bytes_accessed),
        )(xp, wt, pack, t_m)
        return jax.block_until_ready(out)

    try:
        out = _run(True)
    except Exception:
        # JAX/Mosaic build without single-buffered pipeline_mode support on
        # pallas_call BlockSpecs: fall back to default (double) buffering.
        out = _run(False)

    return jnp.transpose(out[:L, :Bn, :D], (1, 0, 2))


# ----------------------------- reference (JAX) --------------------------------
def ref_forward(x, w, b, gamma, beta, T):
    h = jnp.einsum("bld,ed->ble", x, w) + b
    mu = h.mean(-1, keepdims=True)
    var = ((h - mu) ** 2).mean(-1, keepdims=True)
    hn = (h - mu) * lax.rsqrt(var + 1e-5) * gamma + beta
    y = jnp.einsum("ts,bsd->btd", T, hn)
    return y + hn


if __name__ == "__main__":
    d_model, d_state, L, batch = 32, 8, 16, 4

    keys = jax.random.split(jax.random.PRNGKey(0), 11)
    # complex S4D parameters (shapes follow _initialize_s4_parameters)
    A = (np.asarray(-jax.random.uniform(keys[0], (d_state,), jnp.float32) * 0.1)
         + 1j * np.asarray(jax.random.normal(keys[1], (d_state,), jnp.float32) * 0.1))
    Bp = (np.asarray(jax.random.normal(keys[2], (d_state,), jnp.float32))
          + 1j * np.asarray(jax.random.normal(keys[3], (d_state,), jnp.float32))) * 0.02
    Cp = (np.asarray(jax.random.normal(keys[4], (d_state,), jnp.float32))
          + 1j * np.asarray(jax.random.normal(keys[5], (d_state,), jnp.float32))) * 0.02
    Dp_param = (np.asarray(jax.random.normal(keys[6], (d_state,), jnp.float32))
                + 1j * np.asarray(jax.random.normal(keys[7], (d_state,), jnp.float32))) * 0.02

    w = jax.random.normal(keys[8], (d_model, d_model), jnp.float32) * 0.05  # (out, in)
    b = jax.random.normal(keys[9], (d_model,), jnp.float32) * 0.05
    gamma = jnp.ones((d_model,), jnp.float32)
    beta = jnp.zeros((d_model,), jnp.float32)

    x = jax.random.normal(keys[10], (batch, L, d_model), jnp.float32)

    # Build the Toeplitz matrix once (cached by the caller across forwards).
    T = build_s4_toeplitz(A, Bp, Cp, Dp_param, L)

    out = jax.block_until_ready(s4_block_forward(x, w, b, gamma, beta, T))

    ref = jax.block_until_ready(ref_forward(x, w, b, gamma, beta, T))
    np.testing.assert_allclose(np.asarray(out), np.asarray(ref),
                               rtol=3e-2, atol=3e-2)

    print("KERNEL_OK")
</pallas_src>

<mosaic_0001>
module attributes {stable_mosaic.version = 11 : i64} {
  func.func @_s4_block_kernel(%arg0: i32, %arg1: memref<16x4x128xf32, #tpu.memory_space<vmem>>, %arg2: memref<128x128xbf16, #tpu.memory_space<vmem>>, %arg3: memref<3x128xf32, #tpu.memory_space<vmem>>, %arg4: memref<16x16xbf16, #tpu.memory_space<vmem>>, %arg5: memref<16x4x128xf32, #tpu.memory_space<vmem>>) attributes {dimension_semantics = [#tpu.dimension_semantics<parallel>], iteration_bounds = array<i64: 1>, scalar_prefetch = 0 : i64, scratch_operands = 0 : i64, tpu.core_type = #tpu.core_type<tc>, window_params = [{transform_indices = @transform_0, window_bounds = array<i64: 16, 4, 128>}, {pipeline_mode = #tpu.pipeline_mode<synchronous>, transform_indices = @transform_1, window_bounds = array<i64: 128, 128>}, {pipeline_mode = #tpu.pipeline_mode<synchronous>, transform_indices = @transform_2, window_bounds = array<i64: 3, 128>}, {pipeline_mode = #tpu.pipeline_mode<synchronous>, transform_indices = @transform_3, window_bounds = array<i64: 16, 16>}, {transform_indices = @transform_4, window_bounds = array<i64: 16, 4, 128>}]} {
    %c0 = arith.constant 0 : index
    %c0_0 = arith.constant 0 : index
    %c0_1 = arith.constant 0 : index
    %0 = vector.load %arg1[%c0, %c0_0, %c0_1] : memref<16x4x128xf32, #tpu.memory_space<vmem>>, vector<16x4x128xf32>
    %1 = vector.shape_cast %0 : vector<16x4x128xf32> to vector<64x128xf32>
    %2 = arith.truncf %1 : vector<64x128xf32> to vector<64x128xbf16>
    %c0_2 = arith.constant 0 : index
    %c0_3 = arith.constant 0 : index
    %3 = vector.load %arg2[%c0_2, %c0_3] : memref<128x128xbf16, #tpu.memory_space<vmem>>, vector<128x128xbf16>
    %cst = arith.constant dense<0.000000e+00> : vector<64x128xf32>
    %4 = tpu.matmul %2, %3, %cst {dimension_numbers = #tpu.dot_dimension_numbers<[1], [0], [0], [1], [0, 0, 1, 1], [], []>} : vector<64x128xbf16>, vector<128x128xbf16>, vector<64x128xf32> -> vector<64x128xf32>
    %c0_4 = arith.constant 0 : index
    %c0_5 = arith.constant 0 : index
    %5 = vector.load %arg3[%c0_4, %c0_5] : memref<3x128xf32, #tpu.memory_space<vmem>>, vector<1x128xf32>
    %6 = vector.broadcast %5 : vector<1x128xf32> to vector<64x128xf32>
    %7 = arith.addf %4, %6 : vector<64x128xf32>
    %cst_6 = arith.constant dense<0.000000e+00> : vector<64xf32>
    %8 = vector.multi_reduction <add>, %7, %cst_6 [1] : vector<64x128xf32> to vector<64xf32>
    %9 = vector.shape_cast %8 : vector<64xf32> to vector<64x1xf32>
    %cst_7 = arith.constant 3.125000e-02 : f32
    %10 = vector.broadcast %cst_7 : f32 to vector<64x1xf32>
    %11 = arith.mulf %9, %10 : vector<64x1xf32>
    %12 = arith.mulf %7, %7 : vector<64x128xf32>
    %cst_8 = arith.constant dense<0.000000e+00> : vector<64xf32>
    %13 = vector.multi_reduction <add>, %12, %cst_8 [1] : vector<64x128xf32> to vector<64xf32>
    %14 = vector.shape_cast %13 : vector<64xf32> to vector<64x1xf32>
    %cst_9 = arith.constant 3.125000e-02 : f32
    %15 = vector.broadcast %cst_9 : f32 to vector<64x1xf32>
    %16 = arith.mulf %14, %15 : vector<64x1xf32>
    %17 = arith.mulf %11, %11 : vector<64x1xf32>
    %18 = arith.subf %16, %17 : vector<64x1xf32>
    %cst_10 = arith.constant 9.99999974E-6 : f32
    %19 = vector.broadcast %cst_10 : f32 to vector<64x1xf32>
    %20 = arith.addf %18, %19 : vector<64x1xf32>
    %21 = math.rsqrt %20 : vector<64x1xf32>
    %22 = vector.broadcast %11 : vector<64x1xf32> to vector<64x128xf32>
    %23 = arith.subf %7, %22 : vector<64x128xf32>
    %24 = vector.broadcast %21 : vector<64x1xf32> to vector<64x128xf32>
    %25 = arith.mulf %23, %24 : vector<64x128xf32>
    %c1 = arith.constant 1 : index
    %c0_11 = arith.constant 0 : index
    %26 = vector.load %arg3[%c1, %c0_11] : memref<3x128xf32, #tpu.memory_space<vmem>>, vector<1x128xf32>
    %27 = vector.broadcast %26 : vector<1x128xf32> to vector<64x128xf32>
    %28 = arith.mulf %25, %27 : vector<64x128xf32>
    %c2 = arith.constant 2 : index
    %c0_12 = arith.constant 0 : index
    %29 = vector.load %arg3[%c2, %c0_12] : memref<3x128xf32, #tpu.memory_space<vmem>>, vector<1x128xf32>
    %30 = vector.broadcast %29 : vector<1x128xf32> to vector<64x128xf32>
    %31 = arith.addf %28, %30 : vector<64x128xf32>
    %32 = vector.shape_cast %31 : vector<64x128xf32> to vector<16x512xf32>
    %c0_13 = arith.constant 0 : index
    %c0_14 = arith.constant 0 : index
    %33 = vector.load %arg4[%c0_13, %c0_14] : memref<16x16xbf16, #tpu.memory_space<vmem>>, vector<16x16xbf16>
    %34 = arith.truncf %32 : vector<16x512xf32> to vector<16x512xbf16>
    %cst_15 = arith.constant dense<0.000000e+00> : vector<16x512xf32>
    %35 = tpu.matmul %33, %34, %cst_15 {dimension_numbers = #tpu.dot_dimension_numbers<[1], [0], [0], [1], [0, 0, 1, 1], [], []>} : vector<16x16xbf16>, vector<16x512xbf16>, vector<16x512xf32> -> vector<16x512xf32>
    %36 = arith.addf %35, %32 : vector<16x512xf32>
    %37 = vector.shape_cast %36 : vector<16x512xf32> to vector<16x4x128xf32>
    %c0_16 = arith.constant 0 : index
    %c0_17 = arith.constant 0 : index
    %c0_18 = arith.constant 0 : index
    %38 = vector.load %arg5[%c0_16, %c0_17, %c0_18] : memref<16x4x128xf32, #tpu.memory_space<vmem>>, vector<16x4x128xf32>
    tpu.vector_store %arg5[%c0_16, %c0_17, %c0_18], %37 {strides = array<i32>} : memref<16x4x128xf32, #tpu.memory_space<vmem>>, vector<16x4x128xf32>,
    return
  }
  func.func @transform_0(%arg0: i32) -> (i32, i32, i32) {
    %c0_i32 = arith.constant 0 : i32
    %c0_i32_0 = arith.constant 0 : i32
    %c0_i32_1 = arith.constant 0 : i32
    return %c0_i32, %arg0, %c0_i32_0 : i32, i32, i32
  }
  func.func @transform_1(%arg0: i32) -> (i32, i32) {
    %c0_i32 = arith.constant 0 : i32
    %c0_i32_0 = arith.constant 0 : i32
    %c0_i32_1 = arith.constant 0 : i32
    return %c0_i32, %c0_i32_0 : i32, i32
  }
  func.func @transform_2(%arg0: i32) -> (i32, i32) {
    %c0_i32 = arith.constant 0 : i32
    %c0_i32_0 = arith.constant 0 : i32
    %c0_i32_1 = arith.constant 0 : i32
    return %c0_i32, %c0_i32_0 : i32, i32
  }
  func.func @transform_3(%arg0: i32) -> (i32, i32) {
    %c0_i32 = arith.constant 0 : i32
    %c0_i32_0 = arith.constant 0 : i32
    %c0_i32_1 = arith.constant 0 : i32
    return %c0_i32, %c0_i32_0 : i32, i32
  }
  func.func @transform_4(%arg0: i32) -> (i32, i32, i32) {
    %c0_i32 = arith.constant 0 : i32
    %c0_i32_0 = arith.constant 0 : i32
    %c0_i32_1 = arith.constant 0 : i32
    return %c0_i32, %arg0, %c0_i32_0 : i32, i32, i32
  }
}

module attributes {stable_mosaic.version = 11 : i64} {
  func.func @_s4_block_kernel(%arg0: i32, %arg1: memref<16x4x128xf32, #tpu.memory_space<vmem>>, %arg2: memref<128x128xbf16, #tpu.memory_space<vmem>>, %arg3: memref<3x128xf32, #tpu.memory_space<vmem>>, %arg4: memref<16x16xbf16, #tpu.memory_space<vmem>>, %arg5: memref<16x4x128xf32, #tpu.memory_space<vmem>>) attributes {dimension_semantics = [#tpu.dimension_semantics<parallel>], iteration_bounds = array<i64: 1>, scalar_prefetch = 0 : i64, scratch_operands = 0 : i64, tpu.core_type = #tpu.core_type<tc>, window_params = [{transform_indices = @transform_0, window_bounds = array<i64: 16, 4, 128>}, {pipeline_mode = #tpu.pipeline_mode<synchronous>, transform_indices = @transform_1, window_bounds = array<i64: 128, 128>}, {pipeline_mode = #tpu.pipeline_mode<synchronous>, transform_indices = @transform_2, window_bounds = array<i64: 3, 128>}, {pipeline_mode = #tpu.pipeline_mode<synchronous>, transform_indices = @transform_3, window_bounds = array<i64: 16, 16>}, {transform_indices = @transform_4, window_bounds = array<i64: 16, 4, 128>}]} {
    %c0 = arith.constant 0 : index
    %c0_0 = arith.constant 0 : index
    %c0_1 = arith.constant 0 : index
    %0 = vector.load %arg1[%c0, %c0_0, %c0_1] : memref<16x4x128xf32, #tpu.memory_space<vmem>>, vector<16x4x128xf32>
    %1 = vector.shape_cast %0 : vector<16x4x128xf32> to vector<64x128xf32>
    %2 = arith.truncf %1 : vector<64x128xf32> to vector<64x128xbf16>
    %c0_2 = arith.constant 0 : index
    %c0_3 = arith.constant 0 : index
    %3 = vector.load %arg2[%c0_2, %c0_3] : memref<128x128xbf16, #tpu.memory_space<vmem>>, vector<128x128xbf16>
    %cst = arith.constant dense<0.000000e+00> : vector<64x128xf32>
    %4 = tpu.matmul %2, %3, %cst {dimension_numbers = #tpu.dot_dimension_numbers<[1], [0], [0], [1], [0, 0, 1, 1], [], []>} : vector<64x128xbf16>, vector<128x128xbf16>, vector<64x128xf32> -> vector<64x128xf32>
    %c0_4 = arith.constant 0 : index
    %c0_5 = arith.constant 0 : index
    %5 = vector.load %arg3[%c0_4, %c0_5] : memref<3x128xf32, #tpu.memory_space<vmem>>, vector<1x128xf32>
    %6 = vector.broadcast %5 : vector<1x128xf32> to vector<64x128xf32>
    %7 = arith.addf %4, %6 : vector<64x128xf32>
    %cst_6 = arith.constant dense<0.000000e+00> : vector<64xf32>
    %8 = vector.multi_reduction <add>, %7, %cst_6 [1] : vector<64x128xf32> to vector<64xf32>
    %9 = vector.shape_cast %8 : vector<64xf32> to vector<64x1xf32>
    %cst_7 = arith.constant 3.125000e-02 : f32
    %10 = vector.broadcast %cst_7 : f32 to vector<64x1xf32>
    %11 = arith.mulf %9, %10 : vector<64x1xf32>
    %12 = arith.mulf %7, %7 : vector<64x128xf32>
    %cst_8 = arith.constant dense<0.000000e+00> : vector<64xf32>
    %13 = vector.multi_reduction <add>, %12, %cst_8 [1] : vector<64x128xf32> to vector<64xf32>
    %14 = vector.shape_cast %13 : vector<64xf32> to vector<64x1xf32>
    %cst_9 = arith.constant 3.125000e-02 : f32
    %15 = vector.broadcast %cst_9 : f32 to vector<64x1xf32>
    %16 = arith.mulf %14, %15 : vector<64x1xf32>
    %17 = arith.mulf %11, %11 : vector<64x1xf32>
    %18 = arith.subf %16, %17 : vector<64x1xf32>
    %cst_10 = arith.constant 9.99999974E-6 : f32
    %19 = vector.broadcast %cst_10 : f32 to vector<64x1xf32>
    %20 = arith.addf %18, %19 : vector<64x1xf32>
    %21 = math.rsqrt %20 : vector<64x1xf32>
    %22 = vector.broadcast %11 : vector<64x1xf32> to vector<64x128xf32>
    %23 = arith.subf %7, %22 : vector<64x128xf32>
    %24 = vector.broadcast %21 : vector<64x1xf32> to vector<64x128xf32>
    %25 = arith.mulf %23, %24 : vector<64x128xf32>
    %c1 = arith.constant 1 : index
    %c0_11 = arith.constant 0 : index
    %26 = vector.load %arg3[%c1, %c0_11] : memref<3x128xf32, #tpu.memory_space<vmem>>, vector<1x128xf32>
    %27 = vector.broadcast %26 : vector<1x128xf32> to vector<64x128xf32>
    %28 = arith.mulf %25, %27 : vector<64x128xf32>
    %c2 = arith.constant 2 : index
    %c0_12 = arith.constant 0 : index
    %29 = vector.load %arg3[%c2, %c0_12] : memref<3x128xf32, #tpu.memory_space<vmem>>, vector<1x128xf32>
    %30 = vector.broadcast %29 : vector<1x128xf32> to vector<64x128xf32>
    %31 = arith.addf %28, %30 : vector<64x128xf32>
    %32 = vector.shape_cast %31 : vector<64x128xf32> to vector<16x512xf32>
    %c0_13 = arith.constant 0 : index
    %c0_14 = arith.constant 0 : index
    %33 = vector.load %arg4[%c0_13, %c0_14] : memref<16x16xbf16, #tpu.memory_space<vmem>>, vector<16x16xbf16>
    %34 = arith.truncf %32 : vector<16x512xf32> to vector<16x512xbf16>
    %cst_15 = arith.constant dense<0.000000e+00> : vector<16x512xf32>
    %35 = tpu.matmul %33, %34, %cst_15 {dimension_numbers = #tpu.dot_dimension_numbers<[1], [0], [0], [1], [0, 0, 1, 1], [], []>} : vector<16x16xbf16>, vector<16x512xbf16>, vector<16x512xf32> -> vector<16x512xf32>
    %36 = arith.addf %35, %32 : vector<16x512xf32>
    %37 = vector.shape_cast %36 : vector<16x512xf32> to vector<16x4x128xf32>
    %c0_16 = arith.constant 0 : index
    %c0_17 = arith.constant 0 : index
    %c0_18 = arith.constant 0 : index
    %38 = vector.load %arg5[%c0_16, %c0_17, %c0_18] : memref<16x4x128xf32, #tpu.memory_space<vmem>>, vector<16x4x128xf32>
    tpu.vector_store %arg5[%c0_16, %c0_17, %c0_18], %37 {strides = array<i32>} : memref<16x4x128xf32, #tpu.memory_space<vmem>>, vector<16x4x128xf32>,
    return
  }
  func.func @transform_0(%arg0: i32) -> (i32, i32, i32) {
    %c0_i32 = arith.constant 0 : i32
    %c0_i32_0 = arith.constant 0 : i32
    %c0_i32_1 = arith.constant 0 : i32
    return %c0_i32, %arg0, %c0_i32_0 : i32, i32, i32
  }
  func.func @transform_1(%arg0: i32) -> (i32, i32) {
    %c0_i32 = arith.constant 0 : i32
    %c0_i32_0 = arith.constant 0 : i32
    %c0_i32_1 = arith.constant 0 : i32
    return %c0_i32, %c0_i32_0 : i32, i32
  }
  func.func @transform_2(%arg0: i32) -> (i32, i32) {
    %c0_i32 = arith.constant 0 : i32
    %c0_i32_0 = arith.constant 0 : i32
    %c0_i32_1 = arith.constant 0 : i32
    return %c0_i32, %c0_i32_0 : i32, i32
  }
  func.func @transform_3(%arg0: i32) -> (i32, i32) {
    %c0_i32 = arith.constant 0 : i32
    %c0_i32_0 = arith.constant 0 : i32
    %c0_i32_1 = arith.constant 0 : i32
    return %c0_i32, %c0_i32_0 : i32, i32
  }
  func.func @transform_4(%arg0: i32) -> (i32, i32, i32) {
    %c0_i32 = arith.constant 0 : i32
    %c0_i32_0 = arith.constant 0 : i32
    %c0_i32_1 = arith.constant 0 : i32
    return %c0_i32, %arg0, %c0_i32_0 : i32, i32, i32
  }
}

</mosaic_0001>

<llo_original>
// kernel: tpu_custom_call.1
$region0: #{tpu_custom_call.1}
  #allocation0 [shape = 'u32[]', space=smem, size = 0x4, offset = 0x4, fixed_abs, tag = 'smem constant byte address 0x4 - core index']
  #allocation1 [shape = 'u32[72,128]{1,0:T(1,128)}', space=vmem, size = 0x9000, scoped, tag = 'internal scratch']
  %s0 = inlined_call_operand.hbm [shape: f32[16,4,128], index: 0, kind: input, shape index: {}]
  %s1 = inlined_call_operand.hbm [shape: bf16[128,128], index: 1, kind: input, shape index: {}]
  %s2 = inlined_call_operand.hbm [shape: f32[3,128], index: 2, kind: input, shape index: {}]
  %s3 = inlined_call_operand.hbm [shape: bf16[16,16], index: 3, kind: input, shape index: {}]
  %s4 = inlined_call_operand.hbm [shape: f32[16,4,128], index: 4, kind: output, shape index: {}]
  %s5 = sld [smem:[#allocation0]]
  $region42: #{tpu_custom_call.1} parent=0
    _
  %s7 = ssub.s32 1, %s5
  %s8 = scalar_select 0, %s7, %s5
  $region1: #{tpu_custom_call.1} parent=0
    #allocation2 [shape = 'u8[32768]{0}', space=vmem, size = 0x8000, scoped, tag = 'input window, operand 0, single buffered']
    #allocation3 [shape = 's32[1]{0}', space=sflag, size = 0x4, scoped, tag = 'scoped memory for tpu_custom_call.1']
    #allocation4 [shape = 's32[1]{0}', space=sflag, size = 0x4, scoped, tag = 'scoped memory for tpu_custom_call.1']
    #allocation5 [shape = 'u8[32768]{0}', space=vmem, size = 0x8000, scoped, tag = 'input window, operand 1, single buffered']
    #allocation6 [shape = 's32[1]{0}', space=sflag, size = 0x4, scoped, tag = 'scoped memory for tpu_custom_call.1']
    #allocation7 [shape = 'u8[2048]{0}', space=vmem, size = 0x800, scoped, tag = 'input window, operand 2, single buffered']
    #allocation8 [shape = 'u8[4096]{0}', space=vmem, size = 0x1000, scoped, tag = 'input window, operand 3, single buffered']
    #allocation9 [shape = 's32[1]{0}', space=sflag, size = 0x4, scoped, tag = 'scoped memory for tpu_custom_call.1']
    #allocation10 [shape = 'u8[32768]{0}', space=vmem, size = 0x8000, scoped, tag = 'output window, operand 0, single buffered']
    %9 = vsyncpa [#allocation3], 0
    %10 = vsyncpa [#allocation6], 0
    %11 = vsyncpa [#allocation9], 0
    %12 = vsyncpa [#allocation4], 0
    // Predicated region
    $region2: #{tpu_custom_call.1} parent=1 // pred_check
      _
    $region3: #{tpu_custom_call.1} parent=1 // pred_check_branch
      %14 = sbr.rel (0) target = $region5
    $region4: #{tpu_custom_call.1} parent=1 // pred_region
      %16 = vsyncadd [#allocation3], 0
      %s17 = sshll.u32 %s0, 4
      %s18 = int_to_ptr.hbm [resolvable:$true] %s17
      %s19 = sshll.u32 [#allocation2], 4
      %s20 = int_to_ptr.vmem [resolvable:$true] %s19
      %25 = dma.hbm_to_vmem [thread:$0]  %s18, 1024, %s20, [#allocation3], 64, 64, 4
    $region5: #{tpu_custom_call.1} parent=1 // pred_fallthru
      _
    // Predicated region
    $region6: #{tpu_custom_call.1} parent=1 // pred_check
      _
    $region7: #{tpu_custom_call.1} parent=1 // pred_check_branch
      %27 = sbr.rel (0) target = $region9
    $region8: #{tpu_custom_call.1} parent=1 // pred_region
      %29 = vsyncadd [#allocation6], 0
      %s30 = sshll.u32 %s1, 4
      %s31 = int_to_ptr.hbm [resolvable:$true] %s30
      %s32 = sshll.u32 [#allocation5], 4
      %s33 = int_to_ptr.vmem [resolvable:$true] %s32
      %38 = dma.hbm_to_vmem [thread:$0]  %s31, 1024, %s33, [#allocation6], 64, 64, 4
    $region9: #{tpu_custom_call.1} parent=1 // pred_fallthru
      _
    // Predicated region
    $region10: #{tpu_custom_call.1} parent=1 // pred_check
      _
    $region11: #{tpu_custom_call.1} parent=1 // pred_check_branch
      %40 = sbr.rel (0) target = $region13
    $region12: #{tpu_custom_call.1} parent=1 // pred_region
      %42 = vsyncadd [#allocation6], 0
      %s44 = sshll.u32 %s2, 4
      %s45 = int_to_ptr.hbm [resolvable:$true] %s44
      %s46 = sshll.u32 [#allocation7], 4
      %s47 = int_to_ptr.vmem [resolvable:$true] %s46
      %49 = dma.hbm_to_vmem [thread:$0]  %s45, 64, %s47, [#allocation6]
    $region13: #{tpu_custom_call.1} parent=1 // pred_fallthru
      _
    // Predicated region
    $region14: #{tpu_custom_call.1} parent=1 // pred_check
      _
    $region15: #{tpu_custom_call.1} parent=1 // pred_check_branch
      %51 = sbr.rel (0) target = $region17
    $region16: #{tpu_custom_call.1} parent=1 // pred_region
      %53 = vsyncadd [#allocation9], 0
      %s54 = sshll.u32 %s3, 4
      %s55 = int_to_ptr.hbm [resolvable:$true] %s54
      %s56 = sshll.u32 [#allocation8], 4
      %s57 = int_to_ptr.vmem [resolvable:$true] %s56
      %62 = dma.hbm_to_vmem [thread:$0]  %s55, 128, %s57, [#allocation9], 64, 64, 4
    $region17: #{tpu_custom_call.1} parent=1 // pred_fallthru
      _
    // Predicated region
    $region18: #{tpu_custom_call.1} parent=1 // pred_check
      _
    $region19: #{tpu_custom_call.1} parent=1 // pred_check_branch
      %64 = sbr.rel (0) target = $region21
    $region20: #{tpu_custom_call.1} parent=1 // pred_region
      %66 = dma.done [#allocation3], 1024
    $region21: #{tpu_custom_call.1} parent=1 // pred_fallthru
      _
    // Predicated region
    $region22: #{tpu_custom_call.1} parent=1 // pred_check
      _
    $region23: #{tpu_custom_call.1} parent=1 // pred_check_branch
      %68 = sbr.rel (0) target = $region25
    $region24: #{tpu_custom_call.1} parent=1 // pred_region
      %70 = dma.done [#allocation6], 1024
    $region25: #{tpu_custom_call.1} parent=1 // pred_fallthru
      _
    // Predicated region
    $region26: #{tpu_custom_call.1} parent=1 // pred_check
      _
    $region27: #{tpu_custom_call.1} parent=1 // pred_check_branch
      %72 = sbr.rel (0) target = $region29
    $region28: #{tpu_custom_call.1} parent=1 // pred_region
      %74 = dma.done [#allocation6], 64
    $region29: #{tpu_custom_call.1} parent=1 // pred_fallthru
      _
    // Predicated region
    $region30: #{tpu_custom_call.1} parent=1 // pred_check
      _
    $region31: #{tpu_custom_call.1} parent=1 // pred_check_branch
      %76 = sbr.rel (0) target = $region33
    $region32: #{tpu_custom_call.1} parent=1 // pred_region
      %78 = dma.done [#allocation9], 128
    $region33: #{tpu_custom_call.1} parent=1 // pred_fallthru
      _
    %v80 = vld [vmem:[#allocation2] sm:$0xf]
    %v81 = vld [vmem:[#allocation2 + $0x4] sm:$0xf]
    %v82 = vld [vmem:[#allocation2 + $0x8] sm:$0xf]
    %v83 = vld [vmem:[#allocation2 + $0xc] sm:$0xf]
    %v84 = vld [vmem:[#allocation2 + $0x10] sm:$0xf]
    %v85 = vld [vmem:[#allocation2 + $0x14] sm:$0xf]
    %v86 = vld [vmem:[#allocation2 + $0x18] sm:$0xf]
    %v87 = vld [vmem:[#allocation2 + $0x1c] sm:$0xf]
    %v88 = vld [vmem:[#allocation2 + $0x20] sm:$0xf]
    %v89 = vld [vmem:[#allocation2 + $0x24] sm:$0xf]
    %v90 = vld [vmem:[#allocation2 + $0x28] sm:$0xf]
    %v91 = vld [vmem:[#allocation2 + $0x2c] sm:$0xf]
    %v92 = vld [vmem:[#allocation2 + $0x30] sm:$0xf]
    %v93 = vld [vmem:[#allocation2 + $0x34] sm:$0xf]
    %v94 = vld [vmem:[#allocation2 + $0x38] sm:$0xf]
    %v95 = vld [vmem:[#allocation2 + $0x3c] sm:$0xf]
    %112 = vst [vmem:[#allocation1] ss:$2 sm:$0xff] %v80
    %s113 = scalar_lea.vmem [#allocation1], 1
    %114 = vst [vmem:[%s113] ss:$2 sm:$0xff] %v81
    %s115 = scalar_lea.vmem [#allocation1], 16
    %116 = vst [vmem:[%s115] ss:$2 sm:$0xff] %v82
    %s117 = scalar_lea.vmem [#allocation1], 17
    %118 = vst [vmem:[%s117] ss:$2 sm:$0xff] %v83
    %s119 = scalar_lea.vmem [#allocation1], 32
    %120 = vst [vmem:[%s119] ss:$2 sm:$0xff] %v84
    %s121 = scalar_lea.vmem [#allocation1], 33
    %122 = vst [vmem:[%s121] ss:$2 sm:$0xff] %v85
    %s123 = scalar_lea.vmem [#allocation1], 48
    %124 = vst [vmem:[%s123] ss:$2 sm:$0xff] %v86
    %s125 = scalar_lea.vmem [#allocation1], 49
    %126 = vst [vmem:[%s125] ss:$2 sm:$0xff] %v87
    %v127 = vld.sshfl [vmem:[#allocation1] sm:$0xff pattern:$0x75316420]
    %v128 = vld.sshfl [vmem:[#allocation1 + $0x10] sm:$0xff pattern:$0x75316420]
    %v129 = vld.sshfl [vmem:[#allocation1 + $0x20] sm:$0xff pattern:$0x75316420]
    %v130 = vld.sshfl [vmem:[#allocation1 + $0x30] sm:$0xff pattern:$0x75316420]
    %131 = vst [vmem:[#allocation1] ss:$2 sm:$0xff] %v88
    %132 = vst [vmem:[%s113] ss:$2 sm:$0xff] %v89
    %133 = vst [vmem:[%s115] ss:$2 sm:$0xff] %v90
    %134 = vst [vmem:[%s117] ss:$2 sm:$0xff] %v91
    %135 = vst [vmem:[%s119] ss:$2 sm:$0xff] %v92
    %136 = vst [vmem:[%s121] ss:$2 sm:$0xff] %v93
    %137 = vst [vmem:[%s123] ss:$2 sm:$0xff] %v94
    %138 = vst [vmem:[%s125] ss:$2 sm:$0xff] %v95
    %v139 = vld.sshfl [vmem:[#allocation1] sm:$0xff pattern:$0x75316420]
    %v140 = vld.sshfl [vmem:[#allocation1 + $0x10] sm:$0xff pattern:$0x75316420]
    %v141 = vld.sshfl [vmem:[#allocation1 + $0x20] sm:$0xff pattern:$0x75316420]
    %v142 = vld.sshfl [vmem:[#allocation1 + $0x30] sm:$0xff pattern:$0x75316420]
    %v151 = vpack.c.bf16 %v128, %v127
    %v152 = vpack.c.bf16 %v130, %v129
    %v153 = vpack.c.bf16 %v140, %v139
    %v154 = vpack.c.bf16 %v142, %v141
    %v155 = vld [vmem:[#allocation5] sm:$0xf]
    %v156 = vld [vmem:[#allocation5 + $0x4] sm:$0xf]
    %v157 = vld [vmem:[#allocation5 + $0x8] sm:$0xf]
    %v158 = vld [vmem:[#allocation5 + $0xc] sm:$0xf]
    %v159 = vld [vmem:[#allocation5 + $0x10] sm:$0xf]
    %v160 = vld [vmem:[#allocation5 + $0x14] sm:$0xf]
    %v161 = vld [vmem:[#allocation5 + $0x18] sm:$0xf]
    %v162 = vld [vmem:[#allocation5 + $0x1c] sm:$0xf]
    %v163 = vld [vmem:[#allocation5 + $0x20] sm:$0xf]
    %v164 = vld [vmem:[#allocation5 + $0x24] sm:$0xf]
    %v165 = vld [vmem:[#allocation5 + $0x28] sm:$0xf]
    %v166 = vld [vmem:[#allocation5 + $0x2c] sm:$0xf]
    %v167 = vld [vmem:[#allocation5 + $0x30] sm:$0xf]
    %v168 = vld [vmem:[#allocation5 + $0x34] sm:$0xf]
    %v169 = vld [vmem:[#allocation5 + $0x38] sm:$0xf]
    %v170 = vld [vmem:[#allocation5 + $0x3c] sm:$0xf]
    %v171 = vld [vmem:[#allocation7] sm:$0x1]
    %v172 = vperm.slane %v171, 0
    %v189 = vunpack.c.l.b16 %v155
    %v190 = vunpack.c.l.b16 %v156
    %v191 = vunpack.c.l.b16 %v157
    %v192 = vunpack.c.l.b16 %v158
    %v193 = vunpack.c.l.b16 %v159
    %v194 = vunpack.c.l.b16 %v160
    %v195 = vunpack.c.l.b16 %v161
    %v196 = vunpack.c.l.b16 %v162
    %v197 = vunpack.c.l.b16 %v163
    %v198 = vunpack.c.l.b16 %v164
    %v199 = vunpack.c.l.b16 %v165
    %v200 = vunpack.c.l.b16 %v166
    %v201 = vunpack.c.l.b16 %v167
    %v202 = vunpack.c.l.b16 %v168
    %v203 = vunpack.c.l.b16 %v169
    %v204 = vunpack.c.l.b16 %v170
    %v205 = vpack.c.b16 %v190, %v189
    %v206 = vpack.c.b16 %v192, %v191
    %v207 = vpack.c.b16 %v194, %v193
    %v208 = vpack.c.b16 %v196, %v195
    %v209 = vpack.c.b16 %v198, %v197
    %v210 = vpack.c.b16 %v200, %v199
    %v211 = vpack.c.b16 %v202, %v201
    %v212 = vpack.c.b16 %v204, %v203
    %221 = vmatpush.bf16.msra.mxu0 %v212
    %222 = vmatpush.bf16.msra.mxu0 %v211
    %223 = vmatpush.bf16.msra.mxu0 %v210
    %224 = vmatpush.bf16.msra.mxu0 %v209
    %225 = vmatpush.bf16.msra.mxu0 %v208
    %226 = vmatpush.bf16.msra.mxu0 %v207
    %227 = vmatpush.bf16.msra.mxu0 %v206
    %228 = vmatpush.bf16.msra.mxu0 %v205
    %229 = vmatmul.bf16.gmra.mxu0 %v151
    %v230 = vpop.f32.mrf.mxu0
    %v231 = vadd.f32 %v172, %v230
    %v232 = vpop.f32.mrf.mxu0
    %v233 = vadd.f32 %v172, %v232
    %234 = vmatmul.bf16.gmra.mxu0 %v152
    %v235 = vpop.f32.mrf.mxu0
    %v236 = vadd.f32 %v172, %v235
    %v237 = vpop.f32.mrf.mxu0
    %v238 = vadd.f32 %v172, %v237
    %239 = vmatmul.bf16.gmra.mxu0 %v153
    %v240 = vpop.f32.mrf.mxu0
    %v241 = vadd.f32 %v172, %v240
    %v242 = vpop.f32.mrf.mxu0
    %v243 = vadd.f32 %v172, %v242
    %244 = vmatmul.bf16.gmra.mxu0 %v154
    %v245 = vpop.f32.mrf.mxu0
    %v246 = vadd.f32 %v172, %v245
    %v247 = vpop.f32.mrf.mxu0
    %v248 = vadd.f32 %v172, %v247
    %249 = vdwg.mxu0
    %250 = vadd.xlane.f32.xlu0 %v231
    %v251 = vpop.xlane.xlu0 %250
    %252 = vadd.xlane.f32.xlu0 %v233
    %v253 = vpop.xlane.xlu0 %252
    %254 = vadd.xlane.f32.xlu0 %v236
    %v255 = vpop.xlane.xlu0 %254
    %256 = vadd.xlane.f32.xlu0 %v238
    %v257 = vpop.xlane.xlu0 %256
    %258 = vadd.xlane.f32.xlu0 %v241
    %v259 = vpop.xlane.xlu0 %258
    %260 = vadd.xlane.f32.xlu0 %v243
    %v261 = vpop.xlane.xlu0 %260
    %262 = vadd.xlane.f32.xlu0 %v246
    %v263 = vpop.xlane.xlu0 %262
    %264 = vadd.xlane.f32.xlu0 %v248
    %v265 = vpop.xlane.xlu0 %264
    %v266 = vmul.f32 %v251, 0.03125
    %v267 = vmul.f32 %v253, 0.03125
    %v268 = vmul.f32 %v255, 0.03125
    %v269 = vmul.f32 %v257, 0.03125
    %v270 = vmul.f32 %v259, 0.03125
    %v271 = vmul.f32 %v261, 0.03125
    %v272 = vmul.f32 %v263, 0.03125
    %v273 = vmul.f32 %v265, 0.03125
    %v274 = vmul.f32 %v231, %v231
    %v275 = vmul.f32 %v233, %v233
    %v276 = vmul.f32 %v236, %v236
    %v277 = vmul.f32 %v238, %v238
    %v278 = vmul.f32 %v241, %v241
    %v279 = vmul.f32 %v243, %v243
    %v280 = vmul.f32 %v246, %v246
    %v281 = vmul.f32 %v248, %v248
    %282 = vadd.xlane.f32.xlu0 %v274
    %v283 = vpop.xlane.xlu0 %282
    %284 = vadd.xlane.f32.xlu0 %v275
    %v285 = vpop.xlane.xlu0 %284
    %286 = vadd.xlane.f32.xlu0 %v276
    %v287 = vpop.xlane.xlu0 %286
    %288 = vadd.xlane.f32.xlu0 %v277
    %v289 = vpop.xlane.xlu0 %288
    %290 = vadd.xlane.f32.xlu0 %v278
    %v291 = vpop.xlane.xlu0 %290
    %292 = vadd.xlane.f32.xlu0 %v279
    %v293 = vpop.xlane.xlu0 %292
    %294 = vadd.xlane.f32.xlu0 %v280
    %v295 = vpop.xlane.xlu0 %294
    %296 = vadd.xlane.f32.xlu0 %v281
    %v297 = vpop.xlane.xlu0 %296
    %v298 = vmul.f32 %v283, 0.03125
    %v299 = vmul.f32 %v285, 0.03125
    %v300 = vmul.f32 %v287, 0.03125
    %v301 = vmul.f32 %v289, 0.03125
    %v302 = vmul.f32 %v291, 0.03125
    %v303 = vmul.f32 %v293, 0.03125
    %v304 = vmul.f32 %v295, 0.03125
    %v305 = vmul.f32 %v297, 0.03125
    %v306 = vmul.f32 %v266, %v266
    %v307 = vmul.f32 %v267, %v267
    %v308 = vmul.f32 %v268, %v268
    %v309 = vmul.f32 %v269, %v269
    %v310 = vmul.f32 %v270, %v270
    %v311 = vmul.f32 %v271, %v271
    %v312 = vmul.f32 %v272, %v272
    %v313 = vmul.f32 %v273, %v273
    %v314 = vsub.f32 %v298, %v306
    %v315 = vsub.f32 %v299, %v307
    %v316 = vsub.f32 %v300, %v308
    %v317 = vsub.f32 %v301, %v309
    %v318 = vsub.f32 %v302, %v310
    %v319 = vsub.f32 %v303, %v311
    %v320 = vsub.f32 %v304, %v312
    %v321 = vsub.f32 %v305, %v313
    %v322 = vadd.f32 %v314, 1e-05
    %v323 = vadd.f32 %v315, 1e-05
    %v324 = vadd.f32 %v316, 1e-05
    %v325 = vadd.f32 %v317, 1e-05
    %v326 = vadd.f32 %v318, 1e-05
    %v327 = vadd.f32 %v319, 1e-05
    %v328 = vadd.f32 %v320, 1e-05
    %v329 = vadd.f32 %v321, 1e-05
    %v330 = vrsqrt.pop %v322
    %v331 = vmul.f32 %v330, %v322
    %v332 = vmul.f32 %v331, %v330
    %v333 = vmul.f32 0.5, %v332
    %v334 = vsub.f32 1.5, %v333
    %v335 = vmul.f32 %v330, %v334
    %vm336 = vweird.f32 %v322
    %vm337 = vweird.f32 %v330
    %vm338 = vmor %vm336, %vm337
    %v339 = vsel %vm338, %v330, %v335
    %v340 = vrsqrt.pop %v323
    %v341 = vmul.f32 %v340, %v323
    %v342 = vmul.f32 %v341, %v340
    %v343 = vmul.f32 0.5, %v342
    %v344 = vsub.f32 1.5, %v343
    %v345 = vmul.f32 %v340, %v344
    %vm346 = vweird.f32 %v323
    %vm347 = vweird.f32 %v340
    %vm348 = vmor %vm346, %vm347
    %v349 = vsel %vm348, %v340, %v345
    %v350 = vrsqrt.pop %v324
    %v351 = vmul.f32 %v350, %v324
    %v352 = vmul.f32 %v351, %v350
    %v353 = vmul.f32 0.5, %v352
    %v354 = vsub.f32 1.5, %v353
    %v355 = vmul.f32 %v350, %v354
    %vm356 = vweird.f32 %v324
    %vm357 = vweird.f32 %v350
    %vm358 = vmor %vm356, %vm357
    %v359 = vsel %vm358, %v350, %v355
    %v360 = vrsqrt.pop %v325
    %v361 = vmul.f32 %v360, %v325
    %v362 = vmul.f32 %v361, %v360
    %v363 = vmul.f32 0.5, %v362
    %v364 = vsub.f32 1.5, %v363
    %v365 = vmul.f32 %v360, %v364
    %vm366 = vweird.f32 %v325
    %vm367 = vweird.f32 %v360
    %vm368 = vmor %vm366, %vm367
    %v369 = vsel %vm368, %v360, %v365
    %v370 = vrsqrt.pop %v326
    %v371 = vmul.f32 %v370, %v326
    %v372 = vmul.f32 %v371, %v370
    %v373 = vmul.f32 0.5, %v372
    %v374 = vsub.f32 1.5, %v373
    %v375 = vmul.f32 %v370, %v374
    %vm376 = vweird.f32 %v326
    %vm377 = vweird.f32 %v370
    %vm378 = vmor %vm376, %vm377
    %v379 = vsel %vm378, %v370, %v375
    %v380 = vrsqrt.pop %v327
    %v381 = vmul.f32 %v380, %v327
    %v382 = vmul.f32 %v381, %v380
    %v383 = vmul.f32 0.5, %v382
    %v384 = vsub.f32 1.5, %v383
    %v385 = vmul.f32 %v380, %v384
    %vm386 = vweird.f32 %v327
    %vm387 = vweird.f32 %v380
    %vm388 = vmor %vm386, %vm387
    %v389 = vsel %vm388, %v380, %v385
    %v390 = vrsqrt.pop %v328
    %v391 = vmul.f32 %v390, %v328
    %v392 = vmul.f32 %v391, %v390
    %v393 = vmul.f32 0.5, %v392
    %v394 = vsub.f32 1.5, %v393
    %v395 = vmul.f32 %v390, %v394
    %vm396 = vweird.f32 %v328
    %vm397 = vweird.f32 %v390
    %vm398 = vmor %vm396, %vm397
    %v399 = vsel %vm398, %v390, %v395
    %v400 = vrsqrt.pop %v329
    %v401 = vmul.f32 %v400, %v329
    %v402 = vmul.f32 %v401, %v400
    %v403 = vmul.f32 0.5, %v402
    %v404 = vsub.f32 1.5, %v403
    %v405 = vmul.f32 %v400, %v404
    %vm406 = vweird.f32 %v329
    %vm407 = vweird.f32 %v400
    %vm408 = vmor %vm406, %vm407
    %v409 = vsel %vm408, %v400, %v405
    %v410 = vsub.f32 %v231, %v266
    %v411 = vsub.f32 %v233, %v267
    %v412 = vsub.f32 %v236, %v268
    %v413 = vsub.f32 %v238, %v269
    %v414 = vsub.f32 %v241, %v270
    %v415 = vsub.f32 %v243, %v271
    %v416 = vsub.f32 %v246, %v272
    %v417 = vsub.f32 %v248, %v273
    %v418 = vmul.f32 %v410, %v339
    %v419 = vmul.f32 %v411, %v349
    %v420 = vmul.f32 %v412, %v359
    %v421 = vmul.f32 %v413, %v369
    %v422 = vmul.f32 %v414, %v379
    %v423 = vmul.f32 %v415, %v389
    %v424 = vmul.f32 %v416, %v399
    %v425 = vmul.f32 %v417, %v409
    %v426 = vld [vmem:[#allocation7 + $0x1] sm:$0x1]
    %v427 = vperm.slane %v426, 0
    %v428 = vmul.f32 %v418, %v427
    %v429 = vmul.f32 %v419, %v427
    %v430 = vmul.f32 %v420, %v427
    %v431 = vmul.f32 %v421, %v427
    %v432 = vmul.f32 %v422, %v427
    %v433 = vmul.f32 %v423, %v427
    %v434 = vmul.f32 %v424, %v427
    %v435 = vmul.f32 %v425, %v427
    %v436 = vld [vmem:[#allocation7 + $0x2] sm:$0x1]
    %v437 = vperm.slane %v436, 0
    %v438 = vadd.f32 %v428, %v437
    %v439 = vadd.f32 %v429, %v437
    %v440 = vadd.f32 %v430, %v437
    %v441 = vadd.f32 %v431, %v437
    %v442 = vadd.f32 %v432, %v437
    %v443 = vadd.f32 %v433, %v437
    %v444 = vadd.f32 %v434, %v437
    %v445 = vadd.f32 %v435, %v437
    %v447 = vunpack.c.l.s4 1935823168
    %v448 = vunpack.c.0.s8 %v447
    %v449 = vperm.slane %v438, %v448
    %v451 = vunpack.c.l.s4 1935823168
    %v452 = vunpack.c.0.s8 %v451
    %v453 = vperm.slane %v439, %v452
    %v455 = vunpack.c.l.s4 1935823168
    %v456 = vunpack.c.0.s8 %v455
    %v457 = vperm.slane %v440, %v456
    %v459 = vunpack.c.l.s4 1935823168
    %v460 = vunpack.c.0.s8 %v459
    %v461 = vperm.slane %v441, %v460
    %v463 = vunpack.c.l.s4 1935823168
    %v464 = vunpack.c.0.s8 %v463
    %v465 = vperm.slane %v442, %v464
    %v467 = vunpack.c.l.s4 1935823168
    %v468 = vunpack.c.0.s8 %v467
    %v469 = vperm.slane %v443, %v468
    %v471 = vunpack.c.l.s4 1935823168
    %v472 = vunpack.c.0.s8 %v471
    %v473 = vperm.slane %v444, %v472
    %v475 = vunpack.c.l.s4 1935823168
    %v476 = vunpack.c.0.s8 %v475
    %v477 = vperm.slane %v445, %v476
    %v478 = vld [vmem:[#allocation8] sm:$0xf]
    %v479 = vld [vmem:[#allocation8 + $0x4] sm:$0xf]
    %488 = vst [vmem:[#allocation1] ss:$4 sm:$0xff] %v449
    %s489 = scalar_lea.vmem [#allocation1], 1
    %490 = vst [vmem:[%s489] ss:$4 sm:$0xff] %v453
    %s491 = scalar_lea.vmem [#allocation1], 2
    %492 = vst [vmem:[%s491] ss:$4 sm:$0xff] %v457
    %s493 = scalar_lea.vmem [#allocation1], 3
    %494 = vst [vmem:[%s493] ss:$4 sm:$0xff] %v461
    %s495 = scalar_lea.vmem [#allocation1], 32
    %496 = vst [vmem:[%s495] ss:$4 sm:$0xff] %v465
    %s497 = scalar_lea.vmem [#allocation1], 33
    %498 = vst [vmem:[%s497] ss:$4 sm:$0xff] %v469
    %s499 = scalar_lea.vmem [#allocation1], 34
    %500 = vst [vmem:[%s499] ss:$4 sm:$0xff] %v473
    %s501 = scalar_lea.vmem [#allocation1], 35
    %502 = vst [vmem:[%s501] ss:$4 sm:$0xff] %v477
    %v503 = vld.sshfl [vmem:[#allocation1] sm:$0xff pattern:$0x73625140]
    %v504 = vld.sshfl [vmem:[#allocation1 + $0x8] sm:$0xff pattern:$0x73625140]
    %v505 = vld.sshfl [vmem:[#allocation1 + $0x10] sm:$0xff pattern:$0x73625140]
    %v506 = vld.sshfl [vmem:[#allocation1 + $0x18] sm:$0xff pattern:$0x73625140]
    %v507 = vld.sshfl [vmem:[#allocation1 + $0x20] sm:$0xff pattern:$0x73625140]
    %v508 = vld.sshfl [vmem:[#allocation1 + $0x28] sm:$0xff pattern:$0x73625140]
    %v509 = vld.sshfl [vmem:[#allocation1 + $0x30] sm:$0xff pattern:$0x73625140]
    %v510 = vld.sshfl [vmem:[#allocation1 + $0x38] sm:$0xff pattern:$0x73625140]
    %v519 = vpack.c.bf16 %v507, %v503
    %v520 = vpack.c.bf16 %v508, %v504
    %v521 = vpack.c.bf16 %v509, %v505
    %v522 = vpack.c.bf16 %v510, %v506
    %v525 = vunpack.c.l.b16 %v478
    %v526 = vunpack.c.l.b16 %v479
    %v527 = vpack.c.b16 %v526, %v525
    %528 = vst [vmem:[#allocation1] ss:$4 sm:$0xff] %v449
    %s529 = scalar_lea.vmem [#allocation1], 1
    %530 = vst [vmem:[%s529] ss:$4 sm:$0xff] %v453
    %s531 = scalar_lea.vmem [#allocation1], 2
    %532 = vst [vmem:[%s531] ss:$4 sm:$0xff] %v457
    %s533 = scalar_lea.vmem [#allocation1], 3
    %534 = vst [vmem:[%s533] ss:$4 sm:$0xff] %v461
    %s535 = scalar_lea.vmem [#allocation1], 32
    %536 = vst [vmem:[%s535] ss:$4 sm:$0xff] %v465
    %s537 = scalar_lea.vmem [#allocation1], 33
    %538 = vst [vmem:[%s537] ss:$4 sm:$0xff] %v469
    %s539 = scalar_lea.vmem [#allocation1], 34
    %540 = vst [vmem:[%s539] ss:$4 sm:$0xff] %v473
    %s541 = scalar_lea.vmem [#allocation1], 35
    %542 = vst [vmem:[%s541] ss:$4 sm:$0xff] %v477
    %v543 = vld.sshfl [vmem:[#allocation1] sm:$0xff pattern:$0x73625140]
    %v544 = vld.sshfl [vmem:[#allocation1 + $0x8] sm:$0xff pattern:$0x73625140]
    %v545 = vld.sshfl [vmem:[#allocation1 + $0x10] sm:$0xff pattern:$0x73625140]
    %v546 = vld.sshfl [vmem:[#allocation1 + $0x18] sm:$0xff pattern:$0x73625140]
    %v547 = vld.sshfl [vmem:[#allocation1 + $0x20] sm:$0xff pattern:$0x73625140]
    %v548 = vld.sshfl [vmem:[#allocation1 + $0x28] sm:$0xff pattern:$0x73625140]
    %v549 = vld.sshfl [vmem:[#allocation1 + $0x30] sm:$0xff pattern:$0x73625140]
    %v550 = vld.sshfl [vmem:[#allocation1 + $0x38] sm:$0xff pattern:$0x73625140]
    %vm559 = vcmask 130048
    %v561 = vsel %vm559, %v527, 0
    %563 = vmatpush.bf16.msra.mxu0 0
    %564 = vmatpush.bf16.msra.mxu0 0
    %565 = vmatpush.bf16.msra.mxu0 0
    %566 = vmatpush.bf16.msra.mxu0 0
    %567 = vmatpush.bf16.msra.mxu0 0
    %568 = vmatpush.bf16.msra.mxu0 0
    %569 = vmatpush.bf16.msra.mxu0 0
    %570 = vmatpush.bf16.msra.mxu0 %v519
    %571 = vmatmul.bf16.gmra.mxu0 %v561
    %v572 = vpop.f32.mrf.mxu0
    %v573 = vadd.f32 %v543, %v572
    %v574 = vpop.f32.mrf.mxu0
    %v575 = vadd.f32 %v547, %v574
    %576 = vdwg.mxu0
    %577 = vmatpush.bf16.msra.mxu0 0
    %578 = vmatpush.bf16.msra.mxu0 0
    %579 = vmatpush.bf16.msra.mxu0 0
    %580 = vmatpush.bf16.msra.mxu0 0
    %581 = vmatpush.bf16.msra.mxu0 0
    %582 = vmatpush.bf16.msra.mxu0 0
    %583 = vmatpush.bf16.msra.mxu0 0
    %584 = vmatpush.bf16.msra.mxu0 %v520
    %585 = vmatmul.bf16.gmra.mxu0 %v561
    %v586 = vpop.f32.mrf.mxu0
    %v587 = vadd.f32 %v544, %v586
    %v588 = vpop.f32.mrf.mxu0
    %v589 = vadd.f32 %v548, %v588
    %590 = vdwg.mxu0
    %591 = vmatpush.bf16.msra.mxu0 0
    %592 = vmatpush.bf16.msra.mxu0 0
    %593 = vmatpush.bf16.msra.mxu0 0
    %594 = vmatpush.bf16.msra.mxu0 0
    %595 = vmatpush.bf16.msra.mxu0 0
    %596 = vmatpush.bf16.msra.mxu0 0
    %597 = vmatpush.bf16.msra.mxu0 0
    %598 = vmatpush.bf16.msra.mxu0 %v521
    %599 = vmatmul.bf16.gmra.mxu0 %v561
    %v600 = vpop.f32.mrf.mxu0
    %v601 = vadd.f32 %v545, %v600
    %v602 = vpop.f32.mrf.mxu0
    %v603 = vadd.f32 %v549, %v602
    %604 = vdwg.mxu0
    %605 = vmatpush.bf16.msra.mxu0 0
    %606 = vmatpush.bf16.msra.mxu0 0
    %607 = vmatpush.bf16.msra.mxu0 0
    %608 = vmatpush.bf16.msra.mxu0 0
    %609 = vmatpush.bf16.msra.mxu0 0
    %610 = vmatpush.bf16.msra.mxu0 0
    %611 = vmatpush.bf16.msra.mxu0 0
    %612 = vmatpush.bf16.msra.mxu0 %v522
    %613 = vmatmul.bf16.gmra.mxu0 %v561
    %v614 = vpop.f32.mrf.mxu0
    %v615 = vadd.f32 %v546, %v614
    %v616 = vpop.f32.mrf.mxu0
    %v617 = vadd.f32 %v550, %v616
    %618 = vdwg.mxu0
    %621 = vst [vmem:[#allocation10] ss:$4 sm:$0xff] %v573
    %s622 = scalar_lea.vmem [#allocation10], 32
    %623 = vst [vmem:[%s622] ss:$4 sm:$0xff] %v575
    %s626 = scalar_lea.vmem [#allocation10], 1
    %627 = vst [vmem:[%s626] ss:$4 sm:$0xff] %v587
    %s628 = scalar_lea.vmem [#allocation10], 33
    %629 = vst [vmem:[%s628] ss:$4 sm:$0xff] %v589
    %s632 = scalar_lea.vmem [#allocation10], 2
    %633 = vst [vmem:[%s632] ss:$4 sm:$0xff] %v601
    %s634 = scalar_lea.vmem [#allocation10], 34
    %635 = vst [vmem:[%s634] ss:$4 sm:$0xff] %v603
    %s638 = scalar_lea.vmem [#allocation10], 3
    %639 = vst [vmem:[%s638] ss:$4 sm:$0xff] %v615
    %s640 = scalar_lea.vmem [#allocation10], 35
    %641 = vst [vmem:[%s640] ss:$4 sm:$0xff] %v617
    // Predicated region
    $region34: #{tpu_custom_call.1} parent=1 // pred_check
      _
    $region35: #{tpu_custom_call.1} parent=1 // pred_check_branch
      %643 = sbr.rel (0) target = $region37
    $region36: #{tpu_custom_call.1} parent=1 // pred_region
      %645 = vsyncadd [#allocation4], 0
      %s646 = sshll.u32 [#allocation10], 4
      %s647 = int_to_ptr.vmem [resolvable:$true] %s646
      %s648 = sshll.u32 %s4, 4
      %s649 = int_to_ptr.hbm [resolvable:$true] %s648
      %654 = dma.vmem_to_hbm [thread:$0]  %s647, 1024, %s649, [#allocation4], 64, 64, 4
    $region37: #{tpu_custom_call.1} parent=1 // pred_fallthru
      _
    // Predicated region
    $region38: #{tpu_custom_call.1} parent=1 // pred_check
      _
    $region39: #{tpu_custom_call.1} parent=1 // pred_check_branch
      %656 = sbr.rel (0) target = $region41
    $region40: #{tpu_custom_call.1} parent=1 // pred_region
      %658 = dma.done [#allocation4], 1024
    $region41: #{tpu_custom_call.1} parent=1 // pred_fallthru
      _
    %659 = vsyncpa [#allocation3], 1
    %660 = vsyncpa [#allocation6], 1
    %661 = vsyncpa [#allocation9], 1
    %662 = vsyncpa [#allocation4], 1

// kernel: tpu_custom_call.1
$region0: #{tpu_custom_call.1}
  #allocation0 [shape = 'u32[]', space=smem, size = 0x4, offset = 0x4, fixed_abs, tag = 'smem constant byte address 0x4 - core index']
  #allocation1 [shape = 'u32[72,128]{1,0:T(1,128)}', space=vmem, size = 0x9000, scoped, tag = 'internal scratch']
  %s0 = inlined_call_operand.hbm [shape: f32[16,4,128], index: 0, kind: input, shape index: {}]
  %s1 = inlined_call_operand.hbm [shape: bf16[128,128], index: 1, kind: input, shape index: {}]
  %s2 = inlined_call_operand.hbm [shape: f32[3,128], index: 2, kind: input, shape index: {}]
  %s3 = inlined_call_operand.hbm [shape: bf16[16,16], index: 3, kind: input, shape index: {}]
  %s4 = inlined_call_operand.hbm [shape: f32[16,4,128], index: 4, kind: output, shape index: {}]
  %s5 = sld [smem:[#allocation0]]
  $region42: #{tpu_custom_call.1} parent=0
    _
  %s7 = ssub.s32 1, %s5
  %s8 = scalar_select 0, %s7, %s5
  $region1: #{tpu_custom_call.1} parent=0
    #allocation2 [shape = 'u8[32768]{0}', space=vmem, size = 0x8000, scoped, tag = 'input window, operand 0, single buffered']
    #allocation3 [shape = 's32[1]{0}', space=sflag, size = 0x4, scoped, tag = 'scoped memory for tpu_custom_call.1']
    #allocation4 [shape = 's32[1]{0}', space=sflag, size = 0x4, scoped, tag = 'scoped memory for tpu_custom_call.1']
    #allocation5 [shape = 'u8[32768]{0}', space=vmem, size = 0x8000, scoped, tag = 'input window, operand 1, single buffered']
    #allocation6 [shape = 's32[1]{0}', space=sflag, size = 0x4, scoped, tag = 'scoped memory for tpu_custom_call.1']
    #allocation7 [shape = 'u8[2048]{0}', space=vmem, size = 0x800, scoped, tag = 'input window, operand 2, single buffered']
    #allocation8 [shape = 'u8[4096]{0}', space=vmem, size = 0x1000, scoped, tag = 'input window, operand 3, single buffered']
    #allocation9 [shape = 's32[1]{0}', space=sflag, size = 0x4, scoped, tag = 'scoped memory for tpu_custom_call.1']
    #allocation10 [shape = 'u8[32768]{0}', space=vmem, size = 0x8000, scoped, tag = 'output window, operand 0, single buffered']
    %9 = vsyncpa [#allocation3], 0
    %10 = vsyncpa [#allocation6], 0
    %11 = vsyncpa [#allocation9], 0
    %12 = vsyncpa [#allocation4], 0
    // Predicated region
    $region2: #{tpu_custom_call.1} parent=1 // pred_check
      _
    $region3: #{tpu_custom_call.1} parent=1 // pred_check_branch
      %14 = sbr.rel (0) target = $region5
    $region4: #{tpu_custom_call.1} parent=1 // pred_region
      %16 = vsyncadd [#allocation3], 0
      %s17 = sshll.u32 %s0, 4
      %s18 = int_to_ptr.hbm [resolvable:$true] %s17
      %s19 = sshll.u32 [#allocation2], 4
      %s20 = int_to_ptr.vmem [resolvable:$true] %s19
      %25 = dma.hbm_to_vmem [thread:$0]  %s18, 1024, %s20, [#allocation3], 64, 64, 4
    $region5: #{tpu_custom_call.1} parent=1 // pred_fallthru
      _
    // Predicated region
    $region6: #{tpu_custom_call.1} parent=1 // pred_check
      _
    $region7: #{tpu_custom_call.1} parent=1 // pred_check_branch
      %27 = sbr.rel (0) target = $region9
    $region8: #{tpu_custom_call.1} parent=1 // pred_region
      %29 = vsyncadd [#allocation6], 0
      %s30 = sshll.u32 %s1, 4
      %s31 = int_to_ptr.hbm [resolvable:$true] %s30
      %s32 = sshll.u32 [#allocation5], 4
      %s33 = int_to_ptr.vmem [resolvable:$true] %s32
      %38 = dma.hbm_to_vmem [thread:$0]  %s31, 1024, %s33, [#allocation6], 64, 64, 4
    $region9: #{tpu_custom_call.1} parent=1 // pred_fallthru
      _
    // Predicated region
    $region10: #{tpu_custom_call.1} parent=1 // pred_check
      _
    $region11: #{tpu_custom_call.1} parent=1 // pred_check_branch
      %40 = sbr.rel (0) target = $region13
    $region12: #{tpu_custom_call.1} parent=1 // pred_region
      %42 = vsyncadd [#allocation6], 0
      %s44 = sshll.u32 %s2, 4
      %s45 = int_to_ptr.hbm [resolvable:$true] %s44
      %s46 = sshll.u32 [#allocation7], 4
      %s47 = int_to_ptr.vmem [resolvable:$true] %s46
      %49 = dma.hbm_to_vmem [thread:$0]  %s45, 64, %s47, [#allocation6]
    $region13: #{tpu_custom_call.1} parent=1 // pred_fallthru
      _
    // Predicated region
    $region14: #{tpu_custom_call.1} parent=1 // pred_check
      _
    $region15: #{tpu_custom_call.1} parent=1 // pred_check_branch
      %51 = sbr.rel (0) target = $region17
    $region16: #{tpu_custom_call.1} parent=1 // pred_region
      %53 = vsyncadd [#allocation9], 0
      %s54 = sshll.u32 %s3, 4
      %s55 = int_to_ptr.hbm [resolvable:$true] %s54
      %s56 = sshll.u32 [#allocation8], 4
      %s57 = int_to_ptr.vmem [resolvable:$true] %s56
      %62 = dma.hbm_to_vmem [thread:$0]  %s55, 128, %s57, [#allocation9], 64, 64, 4
    $region17: #{tpu_custom_call.1} parent=1 // pred_fallthru
      _
    // Predicated region
    $region18: #{tpu_custom_call.1} parent=1 // pred_check
      _
    $region19: #{tpu_custom_call.1} parent=1 // pred_check_branch
      %64 = sbr.rel (0) target = $region21
    $region20: #{tpu_custom_call.1} parent=1 // pred_region
      %66 = dma.done [#allocation3], 1024
    $region21: #{tpu_custom_call.1} parent=1 // pred_fallthru
      _
    // Predicated region
    $region22: #{tpu_custom_call.1} parent=1 // pred_check
      _
    $region23: #{tpu_custom_call.1} parent=1 // pred_check_branch
      %68 = sbr.rel (0) target = $region25
    $region24: #{tpu_custom_call.1} parent=1 // pred_region
      %70 = dma.done [#allocation6], 1024
    $region25: #{tpu_custom_call.1} parent=1 // pred_fallthru
      _
    // Predicated region
    $region26: #{tpu_custom_call.1} parent=1 // pred_check
      _
    $region27: #{tpu_custom_call.1} parent=1 // pred_check_branch
      %72 = sbr.rel (0) target = $region29
    $region28: #{tpu_custom_call.1} parent=1 // pred_region
      %74 = dma.done [#allocation6], 64
    $region29: #{tpu_custom_call.1} parent=1 // pred_fallthru
      _
    // Predicated region
    $region30: #{tpu_custom_call.1} parent=1 // pred_check
      _
    $region31: #{tpu_custom_call.1} parent=1 // pred_check_branch
      %76 = sbr.rel (0) target = $region33
    $region32: #{tpu_custom_call.1} parent=1 // pred_region
      %78 = dma.done [#allocation9], 128
    $region33: #{tpu_custom_call.1} parent=1 // pred_fallthru
      _
    %v80 = vld [vmem:[#allocation2] sm:$0xf]
    %v81 = vld [vmem:[#allocation2 + $0x4] sm:$0xf]
    %v82 = vld [vmem:[#allocation2 + $0x8] sm:$0xf]
    %v83 = vld [vmem:[#allocation2 + $0xc] sm:$0xf]
    %v84 = vld [vmem:[#allocation2 + $0x10] sm:$0xf]
    %v85 = vld [vmem:[#allocation2 + $0x14] sm:$0xf]
    %v86 = vld [vmem:[#allocation2 + $0x18] sm:$0xf]
    %v87 = vld [vmem:[#allocation2 + $0x1c] sm:$0xf]
    %v88 = vld [vmem:[#allocation2 + $0x20] sm:$0xf]
    %v89 = vld [vmem:[#allocation2 + $0x24] sm:$0xf]
    %v90 = vld [vmem:[#allocation2 + $0x28] sm:$0xf]
    %v91 = vld [vmem:[#allocation2 + $0x2c] sm:$0xf]
    %v92 = vld [vmem:[#allocation2 + $0x30] sm:$0xf]
    %v93 = vld [vmem:[#allocation2 + $0x34] sm:$0xf]
    %v94 = vld [vmem:[#allocation2 + $0x38] sm:$0xf]
    %v95 = vld [vmem:[#allocation2 + $0x3c] sm:$0xf]
    %112 = vst [vmem:[#allocation1] ss:$2 sm:$0xff] %v80
    %s113 = scalar_lea.vmem [#allocation1], 1
    %114 = vst [vmem:[%s113] ss:$2 sm:$0xff] %v81
    %s115 = scalar_lea.vmem [#allocation1], 16
    %116 = vst [vmem:[%s115] ss:$2 sm:$0xff] %v82
    %s117 = scalar_lea.vmem [#allocation1], 17
    %118 = vst [vmem:[%s117] ss:$2 sm:$0xff] %v83
    %s119 = scalar_lea.vmem [#allocation1], 32
    %120 = vst [vmem:[%s119] ss:$2 sm:$0xff] %v84
    %s121 = scalar_lea.vmem [#allocation1], 33
    %122 = vst [vmem:[%s121] ss:$2 sm:$0xff] %v85
    %s123 = scalar_lea.vmem [#allocation1], 48
    %124 = vst [vmem:[%s123] ss:$2 sm:$0xff] %v86
    %s125 = scalar_lea.vmem [#allocation1], 49
    %126 = vst [vmem:[%s125] ss:$2 sm:$0xff] %v87
    %v127 = vld.sshfl [vmem:[#allocation1] sm:$0xff pattern:$0x75316420]
    %v128 = vld.sshfl [vmem:[#allocation1 + $0x10] sm:$0xff pattern:$0x75316420]
    %v129 = vld.sshfl [vmem:[#allocation1 + $0x20] sm:$0xff pattern:$0x75316420]
    %v130 = vld.sshfl [vmem:[#allocation1 + $0x30] sm:$0xff pattern:$0x75316420]
    %131 = vst [vmem:[#allocation1] ss:$2 sm:$0xff] %v88
    %132 = vst [vmem:[%s113] ss:$2 sm:$0xff] %v89
    %133 = vst [vmem:[%s115] ss:$2 sm:$0xff] %v90
    %134 = vst [vmem:[%s117] ss:$2 sm:$0xff] %v91
    %135 = vst [vmem:[%s119] ss:$2 sm:$0xff] %v92
    %136 = vst [vmem:[%s121] ss:$2 sm:$0xff] %v93
    %137 = vst [vmem:[%s123] ss:$2 sm:$0xff] %v94
    %138 = vst [vmem:[%s125] ss:$2 sm:$0xff] %v95
    %v139 = vld.sshfl [vmem:[#allocation1] sm:$0xff pattern:$0x75316420]
    %v140 = vld.sshfl [vmem:[#allocation1 + $0x10] sm:$0xff pattern:$0x75316420]
    %v141 = vld.sshfl [vmem:[#allocation1 + $0x20] sm:$0xff pattern:$0x75316420]
    %v142 = vld.sshfl [vmem:[#allocation1 + $0x30] sm:$0xff pattern:$0x75316420]
    %v151 = vpack.c.bf16 %v128, %v127
    %v152 = vpack.c.bf16 %v130, %v129
    %v153 = vpack.c.bf16 %v140, %v139
    %v154 = vpack.c.bf16 %v142, %v141
    %v155 = vld [vmem:[#allocation5] sm:$0xf]
    %v156 = vld [vmem:[#allocation5 + $0x4] sm:$0xf]
    %v157 = vld [vmem:[#allocation5 + $0x8] sm:$0xf]
    %v158 = vld [vmem:[#allocation5 + $0xc] sm:$0xf]
    %v159 = vld [vmem:[#allocation5 + $0x10] sm:$0xf]
    %v160 = vld [vmem:[#allocation5 + $0x14] sm:$0xf]
    %v161 = vld [vmem:[#allocation5 + $0x18] sm:$0xf]
    %v162 = vld [vmem:[#allocation5 + $0x1c] sm:$0xf]
    %v163 = vld [vmem:[#allocation5 + $0x20] sm:$0xf]
    %v164 = vld [vmem:[#allocation5 + $0x24] sm:$0xf]
    %v165 = vld [vmem:[#allocation5 + $0x28] sm:$0xf]
    %v166 = vld [vmem:[#allocation5 + $0x2c] sm:$0xf]
    %v167 = vld [vmem:[#allocation5 + $0x30] sm:$0xf]
    %v168 = vld [vmem:[#allocation5 + $0x34] sm:$0xf]
    %v169 = vld [vmem:[#allocation5 + $0x38] sm:$0xf]
    %v170 = vld [vmem:[#allocation5 + $0x3c] sm:$0xf]
    %v171 = vld [vmem:[#allocation7] sm:$0x1]
    %v172 = vperm.slane %v171, 0
    %v189 = vunpack.c.l.b16 %v155
    %v190 = vunpack.c.l.b16 %v156
    %v191 = vunpack.c.l.b16 %v157
    %v192 = vunpack.c.l.b16 %v158
    %v193 = vunpack.c.l.b16 %v159
    %v194 = vunpack.c.l.b16 %v160
    %v195 = vunpack.c.l.b16 %v161
    %v196 = vunpack.c.l.b16 %v162
    %v197 = vunpack.c.l.b16 %v163
    %v198 = vunpack.c.l.b16 %v164
    %v199 = vunpack.c.l.b16 %v165
    %v200 = vunpack.c.l.b16 %v166
    %v201 = vunpack.c.l.b16 %v167
    %v202 = vunpack.c.l.b16 %v168
    %v203 = vunpack.c.l.b16 %v169
    %v204 = vunpack.c.l.b16 %v170
    %v205 = vpack.c.b16 %v190, %v189
    %v206 = vpack.c.b16 %v192, %v191
    %v207 = vpack.c.b16 %v194, %v193
    %v208 = vpack.c.b16 %v196, %v195
    %v209 = vpack.c.b16 %v198, %v197
    %v210 = vpack.c.b16 %v200, %v199
    %v211 = vpack.c.b16 %v202, %v201
    %v212 = vpack.c.b16 %v204, %v203
    %221 = vmatpush.bf16.msra.mxu0 %v212
    %222 = vmatpush.bf16.msra.mxu0 %v211
    %223 = vmatpush.bf16.msra.mxu0 %v210
    %224 = vmatpush.bf16.msra.mxu0 %v209
    %225 = vmatpush.bf16.msra.mxu0 %v208
    %226 = vmatpush.bf16.msra.mxu0 %v207
    %227 = vmatpush.bf16.msra.mxu0 %v206
    %228 = vmatpush.bf16.msra.mxu0 %v205
    %229 = vmatmul.bf16.gmra.mxu0 %v151
    %v230 = vpop.f32.mrf.mxu0
    %v231 = vadd.f32 %v172, %v230
    %v232 = vpop.f32.mrf.mxu0
    %v233 = vadd.f32 %v172, %v232
    %234 = vmatmul.bf16.gmra.mxu0 %v152
    %v235 = vpop.f32.mrf.mxu0
    %v236 = vadd.f32 %v172, %v235
    %v237 = vpop.f32.mrf.mxu0
    %v238 = vadd.f32 %v172, %v237
    %239 = vmatmul.bf16.gmra.mxu0 %v153
    %v240 = vpop.f32.mrf.mxu0
    %v241 = vadd.f32 %v172, %v240
    %v242 = vpop.f32.mrf.mxu0
    %v243 = vadd.f32 %v172, %v242
    %244 = vmatmul.bf16.gmra.mxu0 %v154
    %v245 = vpop.f32.mrf.mxu0
    %v246 = vadd.f32 %v172, %v245
    %v247 = vpop.f32.mrf.mxu0
    %v248 = vadd.f32 %v172, %v247
    %249 = vdwg.mxu0
    %250 = vadd.xlane.f32.xlu0 %v231
    %v251 = vpop.xlane.xlu0 %250
    %252 = vadd.xlane.f32.xlu0 %v233
    %v253 = vpop.xlane.xlu0 %252
    %254 = vadd.xlane.f32.xlu0 %v236
    %v255 = vpop.xlane.xlu0 %254
    %256 = vadd.xlane.f32.xlu0 %v238
    %v257 = vpop.xlane.xlu0 %256
    %258 = vadd.xlane.f32.xlu0 %v241
    %v259 = vpop.xlane.xlu0 %258
    %260 = vadd.xlane.f32.xlu0 %v243
    %v261 = vpop.xlane.xlu0 %260
    %262 = vadd.xlane.f32.xlu0 %v246
    %v263 = vpop.xlane.xlu0 %262
    %264 = vadd.xlane.f32.xlu0 %v248
    %v265 = vpop.xlane.xlu0 %264
    %v266 = vmul.f32 %v251, 0.03125
    %v267 = vmul.f32 %v253, 0.03125
    %v268 = vmul.f32 %v255, 0.03125
    %v269 = vmul.f32 %v257, 0.03125
    %v270 = vmul.f32 %v259, 0.03125
    %v271 = vmul.f32 %v261, 0.03125
    %v272 = vmul.f32 %v263, 0.03125
    %v273 = vmul.f32 %v265, 0.03125
    %v274 = vmul.f32 %v231, %v231
    %v275 = vmul.f32 %v233, %v233
    %v276 = vmul.f32 %v236, %v236
    %v277 = vmul.f32 %v238, %v238
    %v278 = vmul.f32 %v241, %v241
    %v279 = vmul.f32 %v243, %v243
    %v280 = vmul.f32 %v246, %v246
    %v281 = vmul.f32 %v248, %v248
    %282 = vadd.xlane.f32.xlu0 %v274
    %v283 = vpop.xlane.xlu0 %282
    %284 = vadd.xlane.f32.xlu0 %v275
    %v285 = vpop.xlane.xlu0 %284
    %286 = vadd.xlane.f32.xlu0 %v276
    %v287 = vpop.xlane.xlu0 %286
    %288 = vadd.xlane.f32.xlu0 %v277
    %v289 = vpop.xlane.xlu0 %288
    %290 = vadd.xlane.f32.xlu0 %v278
    %v291 = vpop.xlane.xlu0 %290
    %292 = vadd.xlane.f32.xlu0 %v279
    %v293 = vpop.xlane.xlu0 %292
    %294 = vadd.xlane.f32.xlu0 %v280
    %v295 = vpop.xlane.xlu0 %294
    %296 = vadd.xlane.f32.xlu0 %v281
    %v297 = vpop.xlane.xlu0 %296
    %v298 = vmul.f32 %v283, 0.03125
    %v299 = vmul.f32 %v285, 0.03125
    %v300 = vmul.f32 %v287, 0.03125
    %v301 = vmul.f32 %v289, 0.03125
    %v302 = vmul.f32 %v291, 0.03125
    %v303 = vmul.f32 %v293, 0.03125
    %v304 = vmul.f32 %v295, 0.03125
    %v305 = vmul.f32 %v297, 0.03125
    %v306 = vmul.f32 %v266, %v266
    %v307 = vmul.f32 %v267, %v267
    %v308 = vmul.f32 %v268, %v268
    %v309 = vmul.f32 %v269, %v269
    %v310 = vmul.f32 %v270, %v270
    %v311 = vmul.f32 %v271, %v271
    %v312 = vmul.f32 %v272, %v272
    %v313 = vmul.f32 %v273, %v273
    %v314 = vsub.f32 %v298, %v306
    %v315 = vsub.f32 %v299, %v307
    %v316 = vsub.f32 %v300, %v308
    %v317 = vsub.f32 %v301, %v309
    %v318 = vsub.f32 %v302, %v310
    %v319 = vsub.f32 %v303, %v311
    %v320 = vsub.f32 %v304, %v312
    %v321 = vsub.f32 %v305, %v313
    %v322 = vadd.f32 %v314, 1e-05
    %v323 = vadd.f32 %v315, 1e-05
    %v324 = vadd.f32 %v316, 1e-05
    %v325 = vadd.f32 %v317, 1e-05
    %v326 = vadd.f32 %v318, 1e-05
    %v327 = vadd.f32 %v319, 1e-05
    %v328 = vadd.f32 %v320, 1e-05
    %v329 = vadd.f32 %v321, 1e-05
    %v330 = vrsqrt.pop %v322
    %v331 = vmul.f32 %v330, %v322
    %v332 = vmul.f32 %v331, %v330
    %v333 = vmul.f32 0.5, %v332
    %v334 = vsub.f32 1.5, %v333
    %v335 = vmul.f32 %v330, %v334
    %vm336 = vweird.f32 %v322
    %vm337 = vweird.f32 %v330
    %vm338 = vmor %vm336, %vm337
    %v339 = vsel %vm338, %v330, %v335
    %v340 = vrsqrt.pop %v323
    %v341 = vmul.f32 %v340, %v323
    %v342 = vmul.f32 %v341, %v340
    %v343 = vmul.f32 0.5, %v342
    %v344 = vsub.f32 1.5, %v343
    %v345 = vmul.f32 %v340, %v344
    %vm346 = vweird.f32 %v323
    %vm347 = vweird.f32 %v340
    %vm348 = vmor %vm346, %vm347
    %v349 = vsel %vm348, %v340, %v345
    %v350 = vrsqrt.pop %v324
    %v351 = vmul.f32 %v350, %v324
    %v352 = vmul.f32 %v351, %v350
    %v353 = vmul.f32 0.5, %v352
    %v354 = vsub.f32 1.5, %v353
    %v355 = vmul.f32 %v350, %v354
    %vm356 = vweird.f32 %v324
    %vm357 = vweird.f32 %v350
    %vm358 = vmor %vm356, %vm357
    %v359 = vsel %vm358, %v350, %v355
    %v360 = vrsqrt.pop %v325
    %v361 = vmul.f32 %v360, %v325
    %v362 = vmul.f32 %v361, %v360
    %v363 = vmul.f32 0.5, %v362
    %v364 = vsub.f32 1.5, %v363
    %v365 = vmul.f32 %v360, %v364
    %vm366 = vweird.f32 %v325
    %vm367 = vweird.f32 %v360
    %vm368 = vmor %vm366, %vm367
    %v369 = vsel %vm368, %v360, %v365
    %v370 = vrsqrt.pop %v326
    %v371 = vmul.f32 %v370, %v326
    %v372 = vmul.f32 %v371, %v370
    %v373 = vmul.f32 0.5, %v372
    %v374 = vsub.f32 1.5, %v373
    %v375 = vmul.f32 %v370, %v374
    %vm376 = vweird.f32 %v326
    %vm377 = vweird.f32 %v370
    %vm378 = vmor %vm376, %vm377
    %v379 = vsel %vm378, %v370, %v375
    %v380 = vrsqrt.pop %v327
    %v381 = vmul.f32 %v380, %v327
    %v382 = vmul.f32 %v381, %v380
    %v383 = vmul.f32 0.5, %v382
    %v384 = vsub.f32 1.5, %v383
    %v385 = vmul.f32 %v380, %v384
    %vm386 = vweird.f32 %v327
    %vm387 = vweird.f32 %v380
    %vm388 = vmor %vm386, %vm387
    %v389 = vsel %vm388, %v380, %v385
    %v390 = vrsqrt.pop %v328
    %v391 = vmul.f32 %v390, %v328
    %v392 = vmul.f32 %v391, %v390
    %v393 = vmul.f32 0.5, %v392
    %v394 = vsub.f32 1.5, %v393
    %v395 = vmul.f32 %v390, %v394
    %vm396 = vweird.f32 %v328
    %vm397 = vweird.f32 %v390
    %vm398 = vmor %vm396, %vm397
    %v399 = vsel %vm398, %v390, %v395
    %v400 = vrsqrt.pop %v329
    %v401 = vmul.f32 %v400, %v329
    %v402 = vmul.f32 %v401, %v400
    %v403 = vmul.f32 0.5, %v402
    %v404 = vsub.f32 1.5, %v403
    %v405 = vmul.f32 %v400, %v404
    %vm406 = vweird.f32 %v329
    %vm407 = vweird.f32 %v400
    %vm408 = vmor %vm406, %vm407
    %v409 = vsel %vm408, %v400, %v405
    %v410 = vsub.f32 %v231, %v266
    %v411 = vsub.f32 %v233, %v267
    %v412 = vsub.f32 %v236, %v268
    %v413 = vsub.f32 %v238, %v269
    %v414 = vsub.f32 %v241, %v270
    %v415 = vsub.f32 %v243, %v271
    %v416 = vsub.f32 %v246, %v272
    %v417 = vsub.f32 %v248, %v273
    %v418 = vmul.f32 %v410, %v339
    %v419 = vmul.f32 %v411, %v349
    %v420 = vmul.f32 %v412, %v359
    %v421 = vmul.f32 %v413, %v369
    %v422 = vmul.f32 %v414, %v379
    %v423 = vmul.f32 %v415, %v389
    %v424 = vmul.f32 %v416, %v399
    %v425 = vmul.f32 %v417, %v409
    %v426 = vld [vmem:[#allocation7 + $0x1] sm:$0x1]
    %v427 = vperm.slane %v426, 0
    %v428 = vmul.f32 %v418, %v427
    %v429 = vmul.f32 %v419, %v427
    %v430 = vmul.f32 %v420, %v427
    %v431 = vmul.f32 %v421, %v427
    %v432 = vmul.f32 %v422, %v427
    %v433 = vmul.f32 %v423, %v427
    %v434 = vmul.f32 %v424, %v427
    %v435 = vmul.f32 %v425, %v427
    %v436 = vld [vmem:[#allocation7 + $0x2] sm:$0x1]
    %v437 = vperm.slane %v436, 0
    %v438 = vadd.f32 %v428, %v437
    %v439 = vadd.f32 %v429, %v437
    %v440 = vadd.f32 %v430, %v437
    %v441 = vadd.f32 %v431, %v437
    %v442 = vadd.f32 %v432, %v437
    %v443 = vadd.f32 %v433, %v437
    %v444 = vadd.f32 %v434, %v437
    %v445 = vadd.f32 %v435, %v437
    %v447 = vunpack.c.l.s4 1935823168
    %v448 = vunpack.c.0.s8 %v447
    %v449 = vperm.slane %v438, %v448
    %v451 = vunpack.c.l.s4 1935823168
    %v452 = vunpack.c.0.s8 %v451
    %v453 = vperm.slane %v439, %v452
    %v455 = vunpack.c.l.s4 1935823168
    %v456 = vunpack.c.0.s8 %v455
    %v457 = vperm.slane %v440, %v456
    %v459 = vunpack.c.l.s4 1935823168
    %v460 = vunpack.c.0.s8 %v459
    %v461 = vperm.slane %v441, %v460
    %v463 = vunpack.c.l.s4 1935823168
    %v464 = vunpack.c.0.s8 %v463
    %v465 = vperm.slane %v442, %v464
    %v467 = vunpack.c.l.s4 1935823168
    %v468 = vunpack.c.0.s8 %v467
    %v469 = vperm.slane %v443, %v468
    %v471 = vunpack.c.l.s4 1935823168
    %v472 = vunpack.c.0.s8 %v471
    %v473 = vperm.slane %v444, %v472
    %v475 = vunpack.c.l.s4 1935823168
    %v476 = vunpack.c.0.s8 %v475
    %v477 = vperm.slane %v445, %v476
    %v478 = vld [vmem:[#allocation8] sm:$0xf]
    %v479 = vld [vmem:[#allocation8 + $0x4] sm:$0xf]
    %488 = vst [vmem:[#allocation1] ss:$4 sm:$0xff] %v449
    %s489 = scalar_lea.vmem [#allocation1], 1
    %490 = vst [vmem:[%s489] ss:$4 sm:$0xff] %v453
    %s491 = scalar_lea.vmem [#allocation1], 2
    %492 = vst [vmem:[%s491] ss:$4 sm:$0xff] %v457
    %s493 = scalar_lea.vmem [#allocation1], 3
    %494 = vst [vmem:[%s493] ss:$4 sm:$0xff] %v461
    %s495 = scalar_lea.vmem [#allocation1], 32
    %496 = vst [vmem:[%s495] ss:$4 sm:$0xff] %v465
    %s497 = scalar_lea.vmem [#allocation1], 33
    %498 = vst [vmem:[%s497] ss:$4 sm:$0xff] %v469
    %s499 = scalar_lea.vmem [#allocation1], 34
    %500 = vst [vmem:[%s499] ss:$4 sm:$0xff] %v473
    %s501 = scalar_lea.vmem [#allocation1], 35
    %502 = vst [vmem:[%s501] ss:$4 sm:$0xff] %v477
    %v503 = vld.sshfl [vmem:[#allocation1] sm:$0xff pattern:$0x73625140]
    %v504 = vld.sshfl [vmem:[#allocation1 + $0x8] sm:$0xff pattern:$0x73625140]
    %v505 = vld.sshfl [vmem:[#allocation1 + $0x10] sm:$0xff pattern:$0x73625140]
    %v506 = vld.sshfl [vmem:[#allocation1 + $0x18] sm:$0xff pattern:$0x73625140]
    %v507 = vld.sshfl [vmem:[#allocation1 + $0x20] sm:$0xff pattern:$0x73625140]
    %v508 = vld.sshfl [vmem:[#allocation1 + $0x28] sm:$0xff pattern:$0x73625140]
    %v509 = vld.sshfl [vmem:[#allocation1 + $0x30] sm:$0xff pattern:$0x73625140]
    %v510 = vld.sshfl [vmem:[#allocation1 + $0x38] sm:$0xff pattern:$0x73625140]
    %v519 = vpack.c.bf16 %v507, %v503
    %v520 = vpack.c.bf16 %v508, %v504
    %v521 = vpack.c.bf16 %v509, %v505
    %v522 = vpack.c.bf16 %v510, %v506
    %v525 = vunpack.c.l.b16 %v478
    %v526 = vunpack.c.l.b16 %v479
    %v527 = vpack.c.b16 %v526, %v525
    %528 = vst [vmem:[#allocation1] ss:$4 sm:$0xff] %v449
    %s529 = scalar_lea.vmem [#allocation1], 1
    %530 = vst [vmem:[%s529] ss:$4 sm:$0xff] %v453
    %s531 = scalar_lea.vmem [#allocation1], 2
    %532 = vst [vmem:[%s531] ss:$4 sm:$0xff] %v457
    %s533 = scalar_lea.vmem [#allocation1], 3
    %534 = vst [vmem:[%s533] ss:$4 sm:$0xff] %v461
    %s535 = scalar_lea.vmem [#allocation1], 32
    %536 = vst [vmem:[%s535] ss:$4 sm:$0xff] %v465
    %s537 = scalar_lea.vmem [#allocation1], 33
    %538 = vst [vmem:[%s537] ss:$4 sm:$0xff] %v469
    %s539 = scalar_lea.vmem [#allocation1], 34
    %540 = vst [vmem:[%s539] ss:$4 sm:$0xff] %v473
    %s541 = scalar_lea.vmem [#allocation1], 35
    %542 = vst [vmem:[%s541] ss:$4 sm:$0xff] %v477
    %v543 = vld.sshfl [vmem:[#allocation1] sm:$0xff pattern:$0x73625140]
    %v544 = vld.sshfl [vmem:[#allocation1 + $0x8] sm:$0xff pattern:$0x73625140]
    %v545 = vld.sshfl [vmem:[#allocation1 + $0x10] sm:$0xff pattern:$0x73625140]
    %v546 = vld.sshfl [vmem:[#allocation1 + $0x18] sm:$0xff pattern:$0x73625140]
    %v547 = vld.sshfl [vmem:[#allocation1 + $0x20] sm:$0xff pattern:$0x73625140]
    %v548 = vld.sshfl [vmem:[#allocation1 + $0x28] sm:$0xff pattern:$0x73625140]
    %v549 = vld.sshfl [vmem:[#allocation1 + $0x30] sm:$0xff pattern:$0x73625140]
    %v550 = vld.sshfl [vmem:[#allocation1 + $0x38] sm:$0xff pattern:$0x73625140]
    %vm559 = vcmask 130048
    %v561 = vsel %vm559, %v527, 0
    %563 = vmatpush.bf16.msra.mxu0 0
    %564 = vmatpush.bf16.msra.mxu0 0
    %565 = vmatpush.bf16.msra.mxu0 0
    %566 = vmatpush.bf16.msra.mxu0 0
    %567 = vmatpush.bf16.msra.mxu0 0
    %568 = vmatpush.bf16.msra.mxu0 0
    %569 = vmatpush.bf16.msra.mxu0 0
    %570 = vmatpush.bf16.msra.mxu0 %v519
    %571 = vmatmul.bf16.gmra.mxu0 %v561
    %v572 = vpop.f32.mrf.mxu0
    %v573 = vadd.f32 %v543, %v572
    %v574 = vpop.f32.mrf.mxu0
    %v575 = vadd.f32 %v547, %v574
    %576 = vdwg.mxu0
    %577 = vmatpush.bf16.msra.mxu0 0
    %578 = vmatpush.bf16.msra.mxu0 0
    %579 = vmatpush.bf16.msra.mxu0 0
    %580 = vmatpush.bf16.msra.mxu0 0
    %581 = vmatpush.bf16.msra.mxu0 0
    %582 = vmatpush.bf16.msra.mxu0 0
    %583 = vmatpush.bf16.msra.mxu0 0
    %584 = vmatpush.bf16.msra.mxu0 %v520
    %585 = vmatmul.bf16.gmra.mxu0 %v561
    %v586 = vpop.f32.mrf.mxu0
    %v587 = vadd.f32 %v544, %v586
    %v588 = vpop.f32.mrf.mxu0
    %v589 = vadd.f32 %v548, %v588
    %590 = vdwg.mxu0
    %591 = vmatpush.bf16.msra.mxu0 0
    %592 = vmatpush.bf16.msra.mxu0 0
    %593 = vmatpush.bf16.msra.mxu0 0
    %594 = vmatpush.bf16.msra.mxu0 0
    %595 = vmatpush.bf16.msra.mxu0 0
    %596 = vmatpush.bf16.msra.mxu0 0
    %597 = vmatpush.bf16.msra.mxu0 0
    %598 = vmatpush.bf16.msra.mxu0 %v521
    %599 = vmatmul.bf16.gmra.mxu0 %v561
    %v600 = vpop.f32.mrf.mxu0
    %v601 = vadd.f32 %v545, %v600
    %v602 = vpop.f32.mrf.mxu0
    %v603 = vadd.f32 %v549, %v602
    %604 = vdwg.mxu0
    %605 = vmatpush.bf16.msra.mxu0 0
    %606 = vmatpush.bf16.msra.mxu0 0
    %607 = vmatpush.bf16.msra.mxu0 0
    %608 = vmatpush.bf16.msra.mxu0 0
    %609 = vmatpush.bf16.msra.mxu0 0
    %610 = vmatpush.bf16.msra.mxu0 0
    %611 = vmatpush.bf16.msra.mxu0 0
    %612 = vmatpush.bf16.msra.mxu0 %v522
    %613 = vmatmul.bf16.gmra.mxu0 %v561
    %v614 = vpop.f32.mrf.mxu0
    %v615 = vadd.f32 %v546, %v614
    %v616 = vpop.f32.mrf.mxu0
    %v617 = vadd.f32 %v550, %v616
    %618 = vdwg.mxu0
    %621 = vst [vmem:[#allocation10] ss:$4 sm:$0xff] %v573
    %s622 = scalar_lea.vmem [#allocation10], 32
    %623 = vst [vmem:[%s622] ss:$4 sm:$0xff] %v575
    %s626 = scalar_lea.vmem [#allocation10], 1
    %627 = vst [vmem:[%s626] ss:$4 sm:$0xff] %v587
    %s628 = scalar_lea.vmem [#allocation10], 33
    %629 = vst [vmem:[%s628] ss:$4 sm:$0xff] %v589
    %s632 = scalar_lea.vmem [#allocation10], 2
    %633 = vst [vmem:[%s632] ss:$4 sm:$0xff] %v601
    %s634 = scalar_lea.vmem [#allocation10], 34
    %635 = vst [vmem:[%s634] ss:$4 sm:$0xff] %v603
    %s638 = scalar_lea.vmem [#allocation10], 3
    %639 = vst [vmem:[%s638] ss:$4 sm:$0xff] %v615
    %s640 = scalar_lea.vmem [#allocation10], 35
    %641 = vst [vmem:[%s640] ss:$4 sm:$0xff] %v617
    // Predicated region
    $region34: #{tpu_custom_call.1} parent=1 // pred_check
      _
    $region35: #{tpu_custom_call.1} parent=1 // pred_check_branch
      %643 = sbr.rel (0) target = $region37
    $region36: #{tpu_custom_call.1} parent=1 // pred_region
      %645 = vsyncadd [#allocation4], 0
      %s646 = sshll.u32 [#allocation10], 4
      %s647 = int_to_ptr.vmem [resolvable:$true] %s646
      %s648 = sshll.u32 %s4, 4
      %s649 = int_to_ptr.hbm [resolvable:$true] %s648
      %654 = dma.vmem_to_hbm [thread:$0]  %s647, 1024, %s649, [#allocation4], 64, 64, 4
    $region37: #{tpu_custom_call.1} parent=1 // pred_fallthru
      _
    // Predicated region
    $region38: #{tpu_custom_call.1} parent=1 // pred_check
      _
    $region39: #{tpu_custom_call.1} parent=1 // pred_check_branch
      %656 = sbr.rel (0) target = $region41
    $region40: #{tpu_custom_call.1} parent=1 // pred_region
      %658 = dma.done [#allocation4], 1024
    $region41: #{tpu_custom_call.1} parent=1 // pred_fallthru
      _
    %659 = vsyncpa [#allocation3], 1
    %660 = vsyncpa [#allocation6], 1
    %661 = vsyncpa [#allocation9], 1
    %662 = vsyncpa [#allocation4], 1

</llo_original>
